<compile_context>
chip_gen: v7x
topology: tpu7x:2x2x1
jax: 0.10.0
libtpu: 0.0.40
codegen_flags: <defaults>
</compile_context>

<pallas_src>
import numpy as np
import jax
import jax.numpy as jnp
from jax import lax
from jax.experimental import pallas as pl
from jax.experimental.pallas import tpu as pltpu

WINDOW_SIZE = 11
LANE = 128
SUBLANE = 8


def _round_up(x, m):
    return (x + m - 1) // m * m


def _gaussian_1d(window_size=WINDOW_SIZE, sigma=1.5):
    # Reference 2D window = outer(g, g) / sum(outer(g, g)) = outer(gn, gn)
    # with gn = g / sum(g)  -> exactly separable.
    x = np.arange(window_size, dtype=np.float64)
    g = np.exp(-((x - window_size // 2) ** 2) / 2.0 / sigma ** 2)
    return g / g.sum()


def _band_matrix(n, g1d):
    """Symmetric band matrix B (n x n) implementing the 1-D 'same' conv with
    zero padding: (img @ B) is the horizontal pass, (B @ img) the vertical
    pass (B is symmetric because g is)."""
    K = len(g1d)
    P = K // 2
    B = np.zeros((n, n), dtype=np.float64)
    for j in range(n):                  # output index
        for dx in range(K):
            k = j + dx - P              # input index (zero padding => drop OOB)
            if 0 <= k < n:
                B[k, j] += g1d[dx]
    return B.astype(np.float32)


def _vmem_config():
    """(pick_tb budget, vmem_limit_bytes) chosen per TPU generation."""
    cap = None
    try:
        cap = getattr(pltpu.get_tpu_info(), "vmem_capacity_bytes", None)
    except Exception:
        cap = None
    if cap is None:
        cap = 64 * 1024 * 1024                      # conservative (v7x-sized)
    if cap >= 100 * 1024 * 1024:                    # v5e / v6e: 128 MiB VMEM
        return 80 * 1024 * 1024, 96 * 1024 * 1024
    return 28 * 1024 * 1024, 44 * 1024 * 1024       # v7x: 64 MiB VMEM


def _pick_tb(n, h_al, w_al, budget_bytes):
    """Largest batch block (<= 8) whose working set fits the budget.
    h_al/w_al are the in-VMEM padded (sublane/lane) sizes used only for the
    estimate; nothing is padded in HBM."""
    per_img = h_al * w_al * 4

    def need(t):
        # 2 inputs x 2 pipeline buffers + ~20 live per-image f32 temps
        # + broadcast Bh (t, H, H) + Bw (W, W) + Bh (H, H), single-buffered.
        return ((4 + 20) * t * per_img
                + t * h_al * h_al * 4
                + (w_al * w_al + h_al * h_al) * 4)

    tb = max(1, min(n, 8))
    while tb > 1 and need(tb) > budget_bytes:
        tb -= 1
    return tb


def _make_kernel(N, NB, TB, H, W):
    M = TB * H
    need_img_mask = (NB * TB) != N

    def kernel(l_ref, t_ref, bw_ref, bh_ref, out_ref):
        l = l_ref[...]            # (TB, H, W) f32
        t = t_ref[...]
        bw = bw_ref[...]          # (W, W) horizontal band matrix
        bh = bh_ref[...]          # (H, H) vertical band matrix

        lt = l * t

        # ------- separable 11x11 Gaussian 'same' conv on the MXU -----------
        #   conv2d(x) = Bh @ (x @ Bw), done per image.
        if TB == 1:
            def conv(x):
                rc = jnp.dot(x.reshape(H, W), bw,
                             preferred_element_type=jnp.float32)
                return jnp.dot(bh, rc,
                               preferred_element_type=jnp.float32
                               ).reshape(TB, H, W)
        else:
            # Hoisted once: Bh broadcast for the batched vertical contraction.
            bh_b = jnp.broadcast_to(bh[None, :, :], (TB, H, H))

            def conv(x):
                rc = jnp.dot(x.reshape(M, W), bw,
                             preferred_element_type=jnp.float32
                             ).reshape(TB, H, W)
                return jnp.einsum('bhk,bkw->bhw', bh_b, rc,
                                  preferred_element_type=jnp.float32)

        mu1 = conv(l)
        mu2 = conv(t)
        e11 = conv(l * l)
        e22 = conv(t * t)
        e12 = conv(lt)

        # ------- SSIM map ---------------------------------------------------
        mu1_sq = mu1 * mu1
        mu2_sq = mu2 * mu2
        mu1_mu2 = mu1 * mu2
        sigma1_sq = e11 - mu1_sq
        sigma2_sq = e22 - mu2_sq
        sigma12 = e12 - mu1_mu2
        c0 = 0.01 ** 2
        c1 = 0.03 ** 2
        num = (2.0 * mu1_mu2 + c0) * (2.0 * sigma12 + c1)
        den = (mu1_sq + mu2_sq + c0) * (sigma1_sq + sigma2_sq + c1)
        ssim_map = num / den            # den >= c0*c1 > 0; exact f32 division

        if need_img_mask:
            # Only the last grid step carries batch padding; cheap (TB,1,1)
            # mask broadcast over H, W.  Padded BCE/Dice contributions are 0.
            b = pl.program_id(0)
            img = lax.broadcasted_iota(jnp.int32, (TB, 1, 1), 0) + b * TB
            ssim_map = jnp.where(img < N, ssim_map, 0.0)

        # ------- BCE (sum); torch BCELoss clamps log terms at -100 ----------
        log_p = jnp.maximum(jnp.log(l), -100.0)
        log_1mp = jnp.maximum(jnp.log(1.0 - l), -100.0)
        bce_map = -(t * log_p + (1.0 - t) * log_1mp)

        ssim_p = jnp.sum(ssim_map)
        bce_p = jnp.sum(bce_map)
        intsn_p = jnp.sum(lt)
        suml_p = jnp.sum(l)
        sumt_p = jnp.sum(t)

        # Single lane-dense partial-sum row for this grid step.
        lane = lax.broadcasted_iota(jnp.int32, (1, 1, LANE), 2)
        out_ref[...] = (jnp.where(lane == 0, ssim_p, 0.0)
                        + jnp.where(lane == 1, bce_p, 0.0)
                        + jnp.where(lane == 2, intsn_p, 0.0)
                        + jnp.where(lane == 3, suml_p, 0.0)
                        + jnp.where(lane == 4, sumt_p, 0.0))

    return kernel


def ssim_dice_bce(logits, targets):
    N, C, H, W = logits.shape
    assert C == 1, "reference module only supports a single channel"

    l = logits.astype(jnp.float32).reshape(N, H, W)
    t = targets.astype(jnp.float32).reshape(N, H, W)

    tb_budget, vmem_limit = _vmem_config()
    H_al = _round_up(H, SUBLANE)
    W_al = _round_up(W, LANE)
    TB = _pick_tb(N, H_al, W_al, tb_budget)
    if N >= 2:
        TB = min(TB, -(-N // 2))        # NB >= 2 -> both v7x TCs get work
    NB = -(-N // TB)
    N_pad = NB * TB
    if N_pad != N:                      # batch pad only; no H/W pad in HBM
        l = jnp.pad(l, ((0, N_pad - N), (0, 0), (0, 0)))
        t = jnp.pad(t, ((0, N_pad - N), (0, 0), (0, 0)))

    g1d = _gaussian_1d()
    bw = jnp.asarray(_band_matrix(W, g1d))          # (W, W)
    bh = jnp.asarray(_band_matrix(H, g1d))          # (H, H)

    kernel = _make_kernel(N, NB, TB, H, W)
    img_spec = pl.BlockSpec((TB, H, W), lambda b: (b, 0, 0))

    outs = pl.pallas_call(
        kernel,
        out_shape=jax.ShapeDtypeStruct((NB, 1, LANE), jnp.float32),
        grid_spec=pltpu.PrefetchScalarGridSpec(
            num_scalar_prefetch=0,
            grid=(NB,),
            in_specs=[img_spec, img_spec,
                      pl.BlockSpec((W, W), lambda b: (0, 0),
                                   pipeline_mode=pl.Buffered(1)),
                      pl.BlockSpec((H, H), lambda b: (0, 0),
                                   pipeline_mode=pl.Buffered(1))],
            out_specs=pl.BlockSpec((1, 1, LANE), lambda b: (b, 0, 0)),
        ),
        compiler_params=pltpu.CompilerParams(
            dimension_semantics=("parallel",),
            vmem_limit_bytes=vmem_limit),
    )(l, t, bw, bh)

    sums = jnp.sum(outs, axis=(0, 1))               # (LANE,) tiny final reduce
    ssim_sum, bce_sum = sums[0], sums[1]
    intsn, suml, sumt = sums[2], sums[3], sums[4]

    cnt = jnp.float32(N * C * H * W)
    ssim_loss = 1.0 - ssim_sum / cnt
    bce_loss = bce_sum / cnt
    dice_loss = 1.0 - (2.0 * intsn + 1.0) / (suml + sumt + 1.0)
    return {'ssim_loss': ssim_loss, 'bce_loss': bce_loss, 'dice_loss': dice_loss}


if __name__ == "__main__":
    key = jax.random.PRNGKey(0)
    k1, k2 = jax.random.split(key)
    N, C, H, W = 2, 1, 16, 16
    # logits in (0,1) (as BCELoss requires), binary float targets
    logits = jax.nn.sigmoid(jax.random.normal(k1, (N, C, H, W), jnp.float32))
    targets = (jax.random.uniform(k2, (N, C, H, W)) > 0.5).astype(jnp.float32)

    out = ssim_dice_bce(logits, targets)
    jax.block_until_ready(out)
    print("KERNEL_OK")
</pallas_src>

<mosaic_0001>
module attributes {stable_mosaic.version = 11 : i64} {
  func.func @kernel(%arg0: i32, %arg1: memref<1x16x16xf32, #tpu.memory_space<vmem>>, %arg2: memref<1x16x16xf32, #tpu.memory_space<vmem>>, %arg3: memref<16x16xf32, #tpu.memory_space<vmem>>, %arg4: memref<16x16xf32, #tpu.memory_space<vmem>>, %arg5: memref<1x1x128xf32, #tpu.memory_space<vmem>>) attributes {dimension_semantics = [#tpu.dimension_semantics<parallel>], iteration_bounds = array<i64: 2>, scalar_prefetch = 0 : i64, scratch_operands = 0 : i64, tpu.core_type = #tpu.core_type<tc>, window_params = [{transform_indices = @transform_0, window_bounds = array<i64: 1, 16, 16>}, {transform_indices = @transform_1, window_bounds = array<i64: 1, 16, 16>}, {pipeline_mode = #tpu.pipeline_mode<synchronous>, transform_indices = @transform_2, window_bounds = array<i64: 16, 16>}, {pipeline_mode = #tpu.pipeline_mode<synchronous>, transform_indices = @transform_3, window_bounds = array<i64: 16, 16>}, {transform_indices = @transform_4, window_bounds = array<i64: 1, 1, 128>}]} {
    %c0 = arith.constant 0 : index
    %c0_0 = arith.constant 0 : index
    %c0_1 = arith.constant 0 : index
    %0 = vector.load %arg1[%c0, %c0_0, %c0_1] : memref<1x16x16xf32, #tpu.memory_space<vmem>>, vector<1x16x16xf32>
    %c0_2 = arith.constant 0 : index
    %c0_3 = arith.constant 0 : index
    %c0_4 = arith.constant 0 : index
    %1 = vector.load %arg2[%c0_2, %c0_3, %c0_4] : memref<1x16x16xf32, #tpu.memory_space<vmem>>, vector<1x16x16xf32>
    %c0_5 = arith.constant 0 : index
    %c0_6 = arith.constant 0 : index
    %2 = vector.load %arg3[%c0_5, %c0_6] : memref<16x16xf32, #tpu.memory_space<vmem>>, vector<16x16xf32>
    %c0_7 = arith.constant 0 : index
    %c0_8 = arith.constant 0 : index
    %3 = vector.load %arg4[%c0_7, %c0_8] : memref<16x16xf32, #tpu.memory_space<vmem>>, vector<16x16xf32>
    %4 = arith.mulf %0, %1 : vector<1x16x16xf32>
    %5 = vector.shape_cast %0 : vector<1x16x16xf32> to vector<16x16xf32>
    %cst = arith.constant dense<0.000000e+00> : vector<16x16xf32>
    %6 = tpu.matmul %5, %2, %cst {dimension_numbers = #tpu.dot_dimension_numbers<[1], [0], [0], [1], [0, 0, 1, 1], [], []>} : vector<16x16xf32>, vector<16x16xf32>, vector<16x16xf32> -> vector<16x16xf32>
    %cst_9 = arith.constant dense<0.000000e+00> : vector<16x16xf32>
    %7 = tpu.matmul %3, %6, %cst_9 {dimension_numbers = #tpu.dot_dimension_numbers<[1], [0], [0], [1], [0, 0, 1, 1], [], []>} : vector<16x16xf32>, vector<16x16xf32>, vector<16x16xf32> -> vector<16x16xf32>
    %8 = vector.shape_cast %7 : vector<16x16xf32> to vector<1x16x16xf32>
    %9 = vector.shape_cast %1 : vector<1x16x16xf32> to vector<16x16xf32>
    %cst_10 = arith.constant dense<0.000000e+00> : vector<16x16xf32>
    %10 = tpu.matmul %9, %2, %cst_10 {dimension_numbers = #tpu.dot_dimension_numbers<[1], [0], [0], [1], [0, 0, 1, 1], [], []>} : vector<16x16xf32>, vector<16x16xf32>, vector<16x16xf32> -> vector<16x16xf32>
    %cst_11 = arith.constant dense<0.000000e+00> : vector<16x16xf32>
    %11 = tpu.matmul %3, %10, %cst_11 {dimension_numbers = #tpu.dot_dimension_numbers<[1], [0], [0], [1], [0, 0, 1, 1], [], []>} : vector<16x16xf32>, vector<16x16xf32>, vector<16x16xf32> -> vector<16x16xf32>
    %12 = vector.shape_cast %11 : vector<16x16xf32> to vector<1x16x16xf32>
    %13 = arith.mulf %0, %0 : vector<1x16x16xf32>
    %14 = vector.shape_cast %13 : vector<1x16x16xf32> to vector<16x16xf32>
    %cst_12 = arith.constant dense<0.000000e+00> : vector<16x16xf32>
    %15 = tpu.matmul %14, %2, %cst_12 {dimension_numbers = #tpu.dot_dimension_numbers<[1], [0], [0], [1], [0, 0, 1, 1], [], []>} : vector<16x16xf32>, vector<16x16xf32>, vector<16x16xf32> -> vector<16x16xf32>
    %cst_13 = arith.constant dense<0.000000e+00> : vector<16x16xf32>
    %16 = tpu.matmul %3, %15, %cst_13 {dimension_numbers = #tpu.dot_dimension_numbers<[1], [0], [0], [1], [0, 0, 1, 1], [], []>} : vector<16x16xf32>, vector<16x16xf32>, vector<16x16xf32> -> vector<16x16xf32>
    %17 = vector.shape_cast %16 : vector<16x16xf32> to vector<1x16x16xf32>
    %18 = arith.mulf %1, %1 : vector<1x16x16xf32>
    %19 = vector.shape_cast %18 : vector<1x16x16xf32> to vector<16x16xf32>
    %cst_14 = arith.constant dense<0.000000e+00> : vector<16x16xf32>
    %20 = tpu.matmul %19, %2, %cst_14 {dimension_numbers = #tpu.dot_dimension_numbers<[1], [0], [0], [1], [0, 0, 1, 1], [], []>} : vector<16x16xf32>, vector<16x16xf32>, vector<16x16xf32> -> vector<16x16xf32>
    %cst_15 = arith.constant dense<0.000000e+00> : vector<16x16xf32>
    %21 = tpu.matmul %3, %20, %cst_15 {dimension_numbers = #tpu.dot_dimension_numbers<[1], [0], [0], [1], [0, 0, 1, 1], [], []>} : vector<16x16xf32>, vector<16x16xf32>, vector<16x16xf32> -> vector<16x16xf32>
    %22 = vector.shape_cast %21 : vector<16x16xf32> to vector<1x16x16xf32>
    %23 = vector.shape_cast %4 : vector<1x16x16xf32> to vector<16x16xf32>
    %cst_16 = arith.constant dense<0.000000e+00> : vector<16x16xf32>
    %24 = tpu.matmul %23, %2, %cst_16 {dimension_numbers = #tpu.dot_dimension_numbers<[1], [0], [0], [1], [0, 0, 1, 1], [], []>} : vector<16x16xf32>, vector<16x16xf32>, vector<16x16xf32> -> vector<16x16xf32>
    %cst_17 = arith.constant dense<0.000000e+00> : vector<16x16xf32>
    %25 = tpu.matmul %3, %24, %cst_17 {dimension_numbers = #tpu.dot_dimension_numbers<[1], [0], [0], [1], [0, 0, 1, 1], [], []>} : vector<16x16xf32>, vector<16x16xf32>, vector<16x16xf32> -> vector<16x16xf32>
    %26 = vector.shape_cast %25 : vector<16x16xf32> to vector<1x16x16xf32>
    %27 = arith.mulf %8, %8 : vector<1x16x16xf32>
    %28 = arith.mulf %12, %12 : vector<1x16x16xf32>
    %29 = arith.mulf %8, %12 : vector<1x16x16xf32>
    %30 = arith.subf %17, %27 : vector<1x16x16xf32>
    %31 = arith.subf %22, %28 : vector<1x16x16xf32>
    %32 = arith.subf %26, %29 : vector<1x16x16xf32>
    %cst_18 = arith.constant 2.000000e+00 : f32
    %33 = vector.broadcast %cst_18 : f32 to vector<1x16x16xf32>
    %34 = arith.mulf %33, %29 : vector<1x16x16xf32>
    %cst_19 = arith.constant 9.99999974E-5 : f32
    %35 = vector.broadcast %cst_19 : f32 to vector<1x16x16xf32>
    %36 = arith.addf %34, %35 : vector<1x16x16xf32>
    %cst_20 = arith.constant 2.000000e+00 : f32
    %37 = vector.broadcast %cst_20 : f32 to vector<1x16x16xf32>
    %38 = arith.mulf %37, %32 : vector<1x16x16xf32>
    %cst_21 = arith.constant 8.99999984E-4 : f32
    %39 = vector.broadcast %cst_21 : f32 to vector<1x16x16xf32>
    %40 = arith.addf %38, %39 : vector<1x16x16xf32>
    %41 = arith.mulf %36, %40 : vector<1x16x16xf32>
    %42 = arith.addf %27, %28 : vector<1x16x16xf32>
    %cst_22 = arith.constant 9.99999974E-5 : f32
    %43 = vector.broadcast %cst_22 : f32 to vector<1x16x16xf32>
    %44 = arith.addf %42, %43 : vector<1x16x16xf32>
    %45 = arith.addf %30, %31 : vector<1x16x16xf32>
    %cst_23 = arith.constant 8.99999984E-4 : f32
    %46 = vector.broadcast %cst_23 : f32 to vector<1x16x16xf32>
    %47 = arith.addf %45, %46 : vector<1x16x16xf32>
    %48 = arith.mulf %44, %47 : vector<1x16x16xf32>
    %49 = arith.divf %41, %48 : vector<1x16x16xf32>
    %50 = math.log %0 : vector<1x16x16xf32>
    %cst_24 = arith.constant -1.000000e+02 : f32
    %51 = vector.broadcast %cst_24 : f32 to vector<1x16x16xf32>
    %52 = arith.maximumf %50, %51 : vector<1x16x16xf32>
    %cst_25 = arith.constant 1.000000e+00 : f32
    %53 = vector.broadcast %cst_25 : f32 to vector<1x16x16xf32>
    %54 = arith.subf %53, %0 : vector<1x16x16xf32>
    %55 = math.log %54 : vector<1x16x16xf32>
    %cst_26 = arith.constant -1.000000e+02 : f32
    %56 = vector.broadcast %cst_26 : f32 to vector<1x16x16xf32>
    %57 = arith.maximumf %55, %56 : vector<1x16x16xf32>
    %58 = arith.mulf %1, %52 : vector<1x16x16xf32>
    %cst_27 = arith.constant 1.000000e+00 : f32
    %59 = vector.broadcast %cst_27 : f32 to vector<1x16x16xf32>
    %60 = arith.subf %59, %1 : vector<1x16x16xf32>
    %61 = arith.mulf %60, %57 : vector<1x16x16xf32>
    %62 = arith.addf %58, %61 : vector<1x16x16xf32>
    %cst_28 = arith.constant 0.000000e+00 : f32
    %63 = vector.broadcast %cst_28 : f32 to vector<1x16x16xf32>
    %64 = arith.subf %63, %62 : vector<1x16x16xf32>
    %65 = vector.shape_cast %49 : vector<1x16x16xf32> to vector<1x1x16x16xf32>
    %cst_29 = arith.constant dense<0.000000e+00> : vector<1xf32>
    %66 = vector.multi_reduction <add>, %65, %cst_29 [1, 2, 3] : vector<1x1x16x16xf32> to vector<1xf32>
    %67 = vector.shape_cast %66 : vector<1xf32> to vector<1x1x1x1xf32>
    %68 = vector.extract %67[0, 0, 0, 0] : f32 from vector<1x1x1x1xf32>
    %69 = vector.shape_cast %64 : vector<1x16x16xf32> to vector<1x1x16x16xf32>
    %cst_30 = arith.constant dense<0.000000e+00> : vector<1xf32>
    %70 = vector.multi_reduction <add>, %69, %cst_30 [1, 2, 3] : vector<1x1x16x16xf32> to vector<1xf32>
    %71 = vector.shape_cast %70 : vector<1xf32> to vector<1x1x1x1xf32>
    %72 = vector.extract %71[0, 0, 0, 0] : f32 from vector<1x1x1x1xf32>
    %73 = vector.shape_cast %4 : vector<1x16x16xf32> to vector<1x1x16x16xf32>
    %cst_31 = arith.constant dense<0.000000e+00> : vector<1xf32>
    %74 = vector.multi_reduction <add>, %73, %cst_31 [1, 2, 3] : vector<1x1x16x16xf32> to vector<1xf32>
    %75 = vector.shape_cast %74 : vector<1xf32> to vector<1x1x1x1xf32>
    %76 = vector.extract %75[0, 0, 0, 0] : f32 from vector<1x1x1x1xf32>
    %77 = vector.shape_cast %0 : vector<1x16x16xf32> to vector<1x1x16x16xf32>
    %cst_32 = arith.constant dense<0.000000e+00> : vector<1xf32>
    %78 = vector.multi_reduction <add>, %77, %cst_32 [1, 2, 3] : vector<1x1x16x16xf32> to vector<1xf32>
    %79 = vector.shape_cast %78 : vector<1xf32> to vector<1x1x1x1xf32>
    %80 = vector.extract %79[0, 0, 0, 0] : f32 from vector<1x1x1x1xf32>
    %81 = vector.shape_cast %1 : vector<1x16x16xf32> to vector<1x1x16x16xf32>
    %cst_33 = arith.constant dense<0.000000e+00> : vector<1xf32>
    %82 = vector.multi_reduction <add>, %81, %cst_33 [1, 2, 3] : vector<1x1x16x16xf32> to vector<1xf32>
    %83 = vector.shape_cast %82 : vector<1xf32> to vector<1x1x1x1xf32>
    %84 = vector.extract %83[0, 0, 0, 0] : f32 from vector<1x1x1x1xf32>
    %85 = tpu.iota {dimensions = array<i32: 2>} : vector<1x1x128xi32>
    %c0_i32 = arith.constant 0 : i32
    %86 = vector.broadcast %c0_i32 : i32 to vector<1x1x128xi32>
    %87 = arith.cmpi eq, %85, %86 : vector<1x1x128xi32>
    %cst_34 = arith.constant 0.000000e+00 : f32
    %88 = vector.broadcast %68 : f32 to vector<1x1x128xf32>
    %89 = vector.broadcast %cst_34 : f32 to vector<1x1x128xf32>
    %90 = arith.select %87, %88, %89 : vector<1x1x128xi1>, vector<1x1x128xf32>
    %c1_i32 = arith.constant 1 : i32
    %91 = vector.broadcast %c1_i32 : i32 to vector<1x1x128xi32>
    %92 = arith.cmpi eq, %85, %91 : vector<1x1x128xi32>
    %cst_35 = arith.constant 0.000000e+00 : f32
    %93 = vector.broadcast %72 : f32 to vector<1x1x128xf32>
    %94 = vector.broadcast %cst_35 : f32 to vector<1x1x128xf32>
    %95 = arith.select %92, %93, %94 : vector<1x1x128xi1>, vector<1x1x128xf32>
    %96 = arith.addf %90, %95 : vector<1x1x128xf32>
    %c2_i32 = arith.constant 2 : i32
    %97 = vector.broadcast %c2_i32 : i32 to vector<1x1x128xi32>
    %98 = arith.cmpi eq, %85, %97 : vector<1x1x128xi32>
    %cst_36 = arith.constant 0.000000e+00 : f32
    %99 = vector.broadcast %76 : f32 to vector<1x1x128xf32>
    %100 = vector.broadcast %cst_36 : f32 to vector<1x1x128xf32>
    %101 = arith.select %98, %99, %100 : vector<1x1x128xi1>, vector<1x1x128xf32>
    %102 = arith.addf %96, %101 : vector<1x1x128xf32>
    %c3_i32 = arith.constant 3 : i32
    %103 = vector.broadcast %c3_i32 : i32 to vector<1x1x128xi32>
    %104 = arith.cmpi eq, %85, %103 : vector<1x1x128xi32>
    %cst_37 = arith.constant 0.000000e+00 : f32
    %105 = vector.broadcast %80 : f32 to vector<1x1x128xf32>
    %106 = vector.broadcast %cst_37 : f32 to vector<1x1x128xf32>
    %107 = arith.select %104, %105, %106 : vector<1x1x128xi1>, vector<1x1x128xf32>
    %108 = arith.addf %102, %107 : vector<1x1x128xf32>
    %c4_i32 = arith.constant 4 : i32
    %109 = vector.broadcast %c4_i32 : i32 to vector<1x1x128xi32>
    %110 = arith.cmpi eq, %85, %109 : vector<1x1x128xi32>
    %cst_38 = arith.constant 0.000000e+00 : f32
    %111 = vector.broadcast %84 : f32 to vector<1x1x128xf32>
    %112 = vector.broadcast %cst_38 : f32 to vector<1x1x128xf32>
    %113 = arith.select %110, %111, %112 : vector<1x1x128xi1>, vector<1x1x128xf32>
    %114 = arith.addf %108, %113 : vector<1x1x128xf32>
    %c0_39 = arith.constant 0 : index
    %c0_40 = arith.constant 0 : index
    %c0_41 = arith.constant 0 : index
    %115 = vector.load %arg5[%c0_39, %c0_40, %c0_41] : memref<1x1x128xf32, #tpu.memory_space<vmem>>, vector<1x1x128xf32>
    tpu.vector_store %arg5[%c0_39, %c0_40, %c0_41], %114 {strides = array<i32>} : memref<1x1x128xf32, #tpu.memory_space<vmem>>, vector<1x1x128xf32>,
    return
  }
  func.func @transform_0(%arg0: i32) -> (i32, i32, i32) {
    %c0_i32 = arith.constant 0 : i32
    %c0_i32_0 = arith.constant 0 : i32
    %c0_i32_1 = arith.constant 0 : i32
    return %arg0, %c0_i32, %c0_i32_0 : i32, i32, i32
  }
  func.func @transform_1(%arg0: i32) -> (i32, i32, i32) {
    %c0_i32 = arith.constant 0 : i32
    %c0_i32_0 = arith.constant 0 : i32
    %c0_i32_1 = arith.constant 0 : i32
    return %arg0, %c0_i32, %c0_i32_0 : i32, i32, i32
  }
  func.func @transform_2(%arg0: i32) -> (i32, i32) {
    %c0_i32 = arith.constant 0 : i32
    %c0_i32_0 = arith.constant 0 : i32
    %c0_i32_1 = arith.constant 0 : i32
    return %c0_i32, %c0_i32_0 : i32, i32
  }
  func.func @transform_3(%arg0: i32) -> (i32, i32) {
    %c0_i32 = arith.constant 0 : i32
    %c0_i32_0 = arith.constant 0 : i32
    %c0_i32_1 = arith.constant 0 : i32
    return %c0_i32, %c0_i32_0 : i32, i32
  }
  func.func @transform_4(%arg0: i32) -> (i32, i32, i32) {
    %c0_i32 = arith.constant 0 : i32
    %c0_i32_0 = arith.constant 0 : i32
    %c0_i32_1 = arith.constant 0 : i32
    return %arg0, %c0_i32, %c0_i32_0 : i32, i32, i32
  }
}

</mosaic_0001>

<llo_original>
// kernel: tpu_custom_call.1
$region0: #{tpu_custom_call.1}
  #allocation0 [shape = 'u32[]', space=smem, size = 0x4, offset = 0x4, fixed_abs, tag = 'smem constant byte address 0x4 - core index']
  #allocation1 [shape = 'u32[144,128]{1,0:T(1,128)}', space=vmem, size = 0x12000, scoped, tag = 'internal scratch']
  %s0 = inlined_call_operand.hbm [shape: f32[2,16,16], index: 0, kind: input, shape index: {}]
  %s1 = inlined_call_operand.hbm [shape: f32[2,16,16], index: 1, kind: input, shape index: {}]
  %s2 = inlined_call_operand.hbm [shape: f32[16,16], index: 2, kind: input, shape index: {}]
  %s3 = inlined_call_operand.hbm [shape: f32[16,16], index: 3, kind: input, shape index: {}]
  %s4 = inlined_call_operand.hbm [shape: f32[2,1,128], index: 4, kind: output, shape index: {}]
  %s5 = sld [smem:[#allocation0]]
  $region65: #{tpu_custom_call.1} parent=0
    _
  %s7 = ssub.s32 1, %s5
  %s8 = scalar_select 0, %s7, %s5
  $region1: #{tpu_custom_call.1} parent=0
    #allocation2 [shape = 'u8[16384]{0}', space=vmem, size = 0x4000, scoped, tag = 'input window, operand 0']
    #allocation3 [shape = 's32[2]{0}', space=sflag, size = 0x8, scoped, tag = 'scoped memory for tpu_custom_call.1']
    #allocation4 [shape = 's32[2]{0}', space=sflag, size = 0x8, scoped, tag = 'scoped memory for tpu_custom_call.1']
    #allocation5 [shape = 'u8[16384]{0}', space=vmem, size = 0x4000, scoped, tag = 'input window, operand 1']
    #allocation6 [shape = 's32[2]{0}', space=sflag, size = 0x8, scoped, tag = 'scoped memory for tpu_custom_call.1']
    #allocation7 [shape = 'u8[8192]{0}', space=vmem, size = 0x2000, scoped, tag = 'input window, operand 2, single buffered']
    #allocation8 [shape = 'u8[8192]{0}', space=vmem, size = 0x2000, scoped, tag = 'input window, operand 3, single buffered']
    #allocation9 [shape = 's32[1]{0}', space=sflag, size = 0x4, scoped, tag = 'scoped memory for tpu_custom_call.1']
    #allocation10 [shape = 'u8[1024]{0}', space=vmem, size = 0x400, scoped, tag = 'output window, operand 0']
    %9 = vsyncpa [#allocation3], 0
    %s10 = scalar_lea.sflag [#allocation3], 1
    %11 = vsyncpa %s10, 0
    %12 = vsyncpa [#allocation6], 0
    %s13 = scalar_lea.sflag [#allocation6], 1
    %14 = vsyncpa %s13, 0
    %15 = vsyncpa [#allocation9], 0
    %16 = vsyncpa [#allocation4], 0
    %s17 = scalar_lea.sflag [#allocation4], 1
    %18 = vsyncpa %s17, 0
    loop: start=0, step=1, limit=4
    $region2: #{tpu_custom_call.1} parent=1 // loop_pre_header
      _
    $region3: #{tpu_custom_call.1} parent=1 // loop_header
      %s20 = sphi 0, %s24
      %p21 = scmp.ge.s32.totalorder %s20, 4
      %s30 = sphi 0, %s32
      %s33 = sphi 0, %s30
      %s34 = sphi 0, %s33
      %s50 = sphi 0, %s34
      %s56 = sphi 0, %s58
      %s59 = sphi 0, %s56
      %s60 = sphi 0, %s59
      %s76 = sphi 0, %s60
      %s80 = sphi 0, %s80
      %s82 = sphi 0, %s80
      %s83 = sphi 0, %s82
      %s97 = sphi 0, %s83
      %s101 = sphi 0, %s101
      %s103 = sphi 0, %s101
      %s104 = sphi 0, %s103
      %s118 = sphi 0, %s104
      %s124 = sphi 0, %s126
      %s127 = sphi 0, %s124
      %s128 = sphi 0, %s127
      %s144 = sphi 0, %s128
    $region4: #{tpu_custom_call.1} parent=1 // loop_header_branch
      %23 = sbr.rel (%p21) target = $region8
    $region5: #{tpu_custom_call.1} parent=1 // loop_body
      %s25 = ssub.s32 %s20, 1
      %s26 = ssub.s32 %s20, 2
      %s27 = sadd.s32 %s20, 1
      %s28 = ssub.s32 %s20, %s27
      %p29 = scmp.eq.s32.totalorder %s28, 0
      %s31 = sadd.s32 %s30, 1
      %s32 = scalar_select %p29, %s30, %s31
      %p35 = pneg %p29
      %p36 = scmp.eq.s32.totalorder %s20, 1
      %p37 = por %p35, %p36
      %p38 = scmp.ne.s32.totalorder %s30, %s33
      %p39 = scmp.eq.s32.totalorder %s20, 0
      %p40 = por %p38, %p39
      %p41 = scmp.ne.s32.totalorder %s30, %s33
      %p42 = scmp.eq.s32.totalorder %s25, 1
      %p43 = por %p41, %p42
      %p44 = scmp.ne.s32.totalorder %s33, %s34
      %p45 = scmp.eq.s32.totalorder %s25, 0
      %p46 = por %p44, %p45
      %p47 = scmp.ne.s32.totalorder %s33, %s34
      %p48 = scmp.eq.s32.totalorder %s26, 1
      %p49 = por %p47, %p48
      %p51 = scmp.ne.s32.totalorder %s34, %s50
      %p52 = scmp.eq.s32.totalorder %s26, 0
      %p53 = por %p51, %p52
      %s54 = ssub.s32 %s20, %s27
      %p55 = scmp.eq.s32.totalorder %s54, 0
      %s57 = sadd.s32 %s56, 1
      %s58 = scalar_select %p55, %s56, %s57
      %p61 = pneg %p55
      %p62 = scmp.eq.s32.totalorder %s20, 1
      %p63 = por %p61, %p62
      %p64 = scmp.ne.s32.totalorder %s56, %s59
      %p65 = scmp.eq.s32.totalorder %s20, 0
      %p66 = por %p64, %p65
      %p67 = scmp.ne.s32.totalorder %s56, %s59
      %p68 = scmp.eq.s32.totalorder %s25, 1
      %p69 = por %p67, %p68
      %p70 = scmp.ne.s32.totalorder %s59, %s60
      %p71 = scmp.eq.s32.totalorder %s25, 0
      %p72 = por %p70, %p71
      %p73 = scmp.ne.s32.totalorder %s59, %s60
      %p74 = scmp.eq.s32.totalorder %s26, 1
      %p75 = por %p73, %p74
      %p77 = scmp.ne.s32.totalorder %s60, %s76
      %p78 = scmp.eq.s32.totalorder %s26, 0
      %p79 = por %p77, %p78
      %s81 = sadd.s32 %s80, 1
      %p84 = scmp.eq.s32.totalorder %s20, 1
      %p85 = scmp.ne.s32.totalorder %s80, %s82
      %p86 = scmp.eq.s32.totalorder %s20, 0
      %p87 = por %p85, %p86
      %p88 = scmp.ne.s32.totalorder %s80, %s82
      %p89 = scmp.eq.s32.totalorder %s25, 1
      %p90 = por %p88, %p89
      %p91 = scmp.ne.s32.totalorder %s82, %s83
      %p92 = scmp.eq.s32.totalorder %s25, 0
      %p93 = por %p91, %p92
      %p94 = scmp.ne.s32.totalorder %s82, %s83
      %p95 = scmp.eq.s32.totalorder %s26, 1
      %p96 = por %p94, %p95
      %p98 = scmp.ne.s32.totalorder %s83, %s97
      %p99 = scmp.eq.s32.totalorder %s26, 0
      %p100 = por %p98, %p99
      %s102 = sadd.s32 %s101, 1
      %p105 = scmp.eq.s32.totalorder %s20, 1
      %p106 = scmp.ne.s32.totalorder %s101, %s103
      %p107 = scmp.eq.s32.totalorder %s20, 0
      %p108 = por %p106, %p107
      %p109 = scmp.ne.s32.totalorder %s101, %s103
      %p110 = scmp.eq.s32.totalorder %s25, 1
      %p111 = por %p109, %p110
      %p112 = scmp.ne.s32.totalorder %s103, %s104
      %p113 = scmp.eq.s32.totalorder %s25, 0
      %p114 = por %p112, %p113
      %p115 = scmp.ne.s32.totalorder %s103, %s104
      %p116 = scmp.eq.s32.totalorder %s26, 1
      %p117 = por %p115, %p116
      %p119 = scmp.ne.s32.totalorder %s104, %s118
      %p120 = scmp.eq.s32.totalorder %s26, 0
      %p121 = por %p119, %p120
      %s122 = ssub.s32 %s20, %s27
      %p123 = scmp.eq.s32.totalorder %s122, 0
      %s125 = sadd.s32 %s124, 1
      %s126 = scalar_select %p123, %s124, %s125
      %p129 = pneg %p123
      %p130 = scmp.eq.s32.totalorder %s20, 1
      %p131 = por %p129, %p130
      %p132 = scmp.ne.s32.totalorder %s124, %s127
      %p133 = scmp.eq.s32.totalorder %s20, 0
      %p134 = por %p132, %p133
      %p135 = scmp.ne.s32.totalorder %s124, %s127
      %p136 = scmp.eq.s32.totalorder %s25, 1
      %p137 = por %p135, %p136
      %p138 = scmp.ne.s32.totalorder %s127, %s128
      %p139 = scmp.eq.s32.totalorder %s25, 0
      %p140 = por %p138, %p139
      %p141 = scmp.ne.s32.totalorder %s127, %s128
      %p142 = scmp.eq.s32.totalorder %s26, 1
      %p143 = por %p141, %p142
      %p145 = scmp.ne.s32.totalorder %s128, %s144
      %p146 = scmp.eq.s32.totalorder %s26, 0
      %p147 = por %p145, %p146
      %p148 = scmp.le.s32.totalorder 1, %s20
      %p149 = scmp.lt.s32.totalorder %s20, 3
      %p150 = pnand %p148, %p149
      %p151 = pneg %p150
      // Predicated region
      $region9: #{tpu_custom_call.1} parent=5 // pred_check
        _
      $region10: #{tpu_custom_call.1} parent=5 // pred_check_branch
        %153 = sbr.rel (%p150) target = $region12
      $region11: #{tpu_custom_call.1} parent=5 // pred_region
        %s154 = ssub.s32 %s20, 1
        // Predicated region
        $region13: #{tpu_custom_call.1} parent=11 // pred_check
          %p155 = pneg %p93
        $region14: #{tpu_custom_call.1} parent=11 // pred_check_branch
          %157 = sbr.rel (%p155) target = $region16
        $region15: #{tpu_custom_call.1} parent=11 // pred_region
          %s159 = ssub.s32 256, 256
          %160 = vsyncadd [#allocation6], %s159
          %s161 = sshll.u32 [#allocation7], 4
          %s162 = int_to_ptr.vmem [resolvable:$true] %s161
          %167 = dma.hbm_to_vmem [thread:$0]  %s2, 256, %s162, [#allocation6], 128, 128, 8
        $region16: #{tpu_custom_call.1} parent=11 // pred_fallthru
          _
        // Predicated region
        $region17: #{tpu_custom_call.1} parent=11 // pred_check
          %p168 = pneg %p114
        $region18: #{tpu_custom_call.1} parent=11 // pred_check_branch
          %170 = sbr.rel (%p168) target = $region20
        $region19: #{tpu_custom_call.1} parent=11 // pred_region
          %s172 = ssub.s32 256, 256
          %173 = vsyncadd [#allocation9], %s172
          %s174 = sshll.u32 [#allocation8], 4
          %s175 = int_to_ptr.vmem [resolvable:$true] %s174
          %180 = dma.hbm_to_vmem [thread:$0]  %s3, 256, %s175, [#allocation9], 128, 128, 8
        $region20: #{tpu_custom_call.1} parent=11 // pred_fallthru
          _
      $region12: #{tpu_custom_call.1} parent=5 // pred_fallthru
        _
      %p181 = scmp.lt.s32.totalorder %s20, 2
      // Predicated region
      $region21: #{tpu_custom_call.1} parent=5 // pred_check
        %p182 = pneg %p181
      $region22: #{tpu_custom_call.1} parent=5 // pred_check_branch
        %184 = sbr.rel (%p182) target = $region24
      $region23: #{tpu_custom_call.1} parent=5 // pred_region
        // Predicated region
        $region25: #{tpu_custom_call.1} parent=23 // pred_check
          %p185 = pneg %p40
        $region26: #{tpu_custom_call.1} parent=23 // pred_check_branch
          %187 = sbr.rel (%p185) target = $region28
        $region27: #{tpu_custom_call.1} parent=23 // pred_region
          %s188 = sand.u32 %s30, 1
          %s189 = scalar_lea.sflag [#allocation3], %s188
          %s190 = sand.u32 %s30, 1
          %s191 = smul.addr %s190, 16
          %s192 = scalar_lea.vmem [#allocation2], %s191
          %s194 = ssub.s32 256, 256
          %195 = vsyncadd %s189, %s194
          %s196 = smul.addr %s20, 2
          %s197 = smul.addr %s196, 128
          %s198 = scalar_lea.hbm %s0, %s197
          %s199 = sshll.u32 %s192, 4
          %s200 = int_to_ptr.vmem [resolvable:$true] %s199
          %205 = dma.hbm_to_vmem [thread:$0]  %s198, 256, %s200, %s189, 128, 128, 8
        $region28: #{tpu_custom_call.1} parent=23 // pred_fallthru
          _
        // Predicated region
        $region29: #{tpu_custom_call.1} parent=23 // pred_check
          %p206 = pneg %p66
        $region30: #{tpu_custom_call.1} parent=23 // pred_check_branch
          %208 = sbr.rel (%p206) target = $region32
        $region31: #{tpu_custom_call.1} parent=23 // pred_region
          %s209 = sand.u32 %s20, 1
          %s210 = scalar_lea.sflag [#allocation6], %s209
          %s211 = sand.u32 %s56, 1
          %s212 = smul.addr %s211, 16
          %s213 = scalar_lea.vmem [#allocation5], %s212
          %s215 = ssub.s32 256, 256
          %216 = vsyncadd %s210, %s215
          %s217 = smul.addr %s20, 2
          %s218 = smul.addr %s217, 128
          %s219 = scalar_lea.hbm %s1, %s218
          %s220 = sshll.u32 %s213, 4
          %s221 = int_to_ptr.vmem [resolvable:$true] %s220
          %226 = dma.hbm_to_vmem [thread:$0]  %s219, 256, %s221, %s210, 128, 128, 8
        $region32: #{tpu_custom_call.1} parent=23 // pred_fallthru
          _
      $region24: #{tpu_custom_call.1} parent=5 // pred_fallthru
        _
      %p227 = scmp.le.s32.totalorder 1, %s20
      %p228 = scmp.lt.s32.totalorder %s20, 3
      %p229 = pnand %p227, %p228
      %p230 = pneg %p229
      // Predicated region
      $region33: #{tpu_custom_call.1} parent=5 // pred_check
        _
      $region34: #{tpu_custom_call.1} parent=5 // pred_check_branch
        %232 = sbr.rel (%p229) target = $region36
      $region35: #{tpu_custom_call.1} parent=5 // pred_region
        %s233 = ssub.s32 %s20, 1
        %s234 = sand.u32 %s33, 1
        %s235 = scalar_lea.sflag [#allocation3], %s234
        %s236 = sand.u32 %s33, 1
        %s237 = smul.addr %s236, 16
        %s238 = scalar_lea.vmem [#allocation2], %s237
        // Predicated region
        $region37: #{tpu_custom_call.1} parent=35 // pred_check
          %p239 = pneg %p46
        $region38: #{tpu_custom_call.1} parent=35 // pred_check_branch
          %241 = sbr.rel (%p239) target = $region40
        $region39: #{tpu_custom_call.1} parent=35 // pred_region
          %242 = dma.done %s235, 256
        $region40: #{tpu_custom_call.1} parent=35 // pred_fallthru
          _
        %s243 = sand.u32 %s25, 1
        %s244 = scalar_lea.sflag [#allocation6], %s243
        %s245 = sand.u32 %s59, 1
        %s246 = smul.addr %s245, 16
        %s247 = scalar_lea.vmem [#allocation5], %s246
        // Predicated region
        $region41: #{tpu_custom_call.1} parent=35 // pred_check
          %p248 = pneg %p72
        $region42: #{tpu_custom_call.1} parent=35 // pred_check_branch
          %250 = sbr.rel (%p248) target = $region44
        $region43: #{tpu_custom_call.1} parent=35 // pred_region
          %251 = dma.done %s244, 256
        $region44: #{tpu_custom_call.1} parent=35 // pred_fallthru
          _
        // Predicated region
        $region45: #{tpu_custom_call.1} parent=35 // pred_check
          %p252 = pneg %p93
        $region46: #{tpu_custom_call.1} parent=35 // pred_check_branch
          %254 = sbr.rel (%p252) target = $region48
        $region47: #{tpu_custom_call.1} parent=35 // pred_region
          %255 = dma.done [#allocation6], 256
        $region48: #{tpu_custom_call.1} parent=35 // pred_fallthru
          _
        // Predicated region
        $region49: #{tpu_custom_call.1} parent=35 // pred_check
          %p256 = pneg %p114
        $region50: #{tpu_custom_call.1} parent=35 // pred_check_branch
          %258 = sbr.rel (%p256) target = $region52
        $region51: #{tpu_custom_call.1} parent=35 // pred_region
          %259 = dma.done [#allocation9], 256
        $region52: #{tpu_custom_call.1} parent=35 // pred_fallthru
          _
        %s260 = sand.u32 %s33, 1
        %s261 = scalar_lea.sflag [#allocation3], %s260
        %s262 = sand.u32 %s33, 1
        %s263 = smul.addr %s262, 16
        %s264 = scalar_lea.vmem [#allocation2], %s263
        %p265 = pneg %p46
        %p266 = pneg %p43
        %s267 = sand.u32 %s25, 1
        %s268 = scalar_lea.sflag [#allocation6], %s267
        %s269 = sand.u32 %s59, 1
        %s270 = smul.addr %s269, 16
        %s271 = scalar_lea.vmem [#allocation5], %s270
        %p272 = pneg %p72
        %p273 = pneg %p69
        %p274 = pneg %p93
        %p275 = pneg %p90
        %p276 = pneg %p114
        %p277 = pneg %p111
        %p278 = pneg %p140
        %p279 = pneg %p137
        %s280 = sand.u32 %s127, 1
        %s281 = scalar_lea.sflag [#allocation4], %s280
        %s282 = sand.u32 %s127, 1
        %s283 = scalar_lea.vmem [#allocation10], %s282
        %v284 = vld [vmem:[%s238] sm:$0xff]
        %v285 = vld [vmem:[%s238 + $0x8] sm:$0xff]
        %v286 = vld [vmem:[%s247] sm:$0xff]
        %v287 = vld [vmem:[%s247 + $0x8] sm:$0xff]
        %v288 = vld [vmem:[#allocation7] sm:$0xff]
        %v289 = vld [vmem:[#allocation7 + $0x8] sm:$0xff]
        %v290 = vld [vmem:[#allocation8] sm:$0xff]
        %v291 = vld [vmem:[#allocation8 + $0x8] sm:$0xff]
        %v292 = vmul.f32 %v284, %v286
        %v293 = vmul.f32 %v285, %v287
        %vm294 = vcmask 130048
        %v296 = vsel %vm294, %v284, 0
        %v299 = vsel %vm294, %v285, 0
        %301 = vmatprep.subr.mxu0 0.0
        %302 = vmatpush1.msra.mxu0 %v288
        %303 = vmatprep.subr.mxu0 0.0
        %304 = vmatpush1.msra.mxu0 %v289
        %305 = vmatprep.subr.mxu0 0.0
        %306 = vmatpush1.msra.mxu0 0.0
        %307 = vmatprep.subr.mxu0 0.0
        %308 = vmatpush1.msra.mxu0 0.0
        %309 = vmatprep.subr.mxu0 0.0
        %310 = vmatpush1.msra.mxu0 0.0
        %311 = vmatprep.subr.mxu0 0.0
        %312 = vmatpush1.msra.mxu0 0.0
        %313 = vmatprep.subr.mxu0 0.0
        %314 = vmatpush1.msra.mxu0 0.0
        %315 = vmatprep.subr.mxu0 0.0
        %316 = vmatpush1.msra.mxu0 0.0
        %317 = vmatprep.subr.mxu0 0.0
        %318 = vmatpush1.msra.mxu0 0.0
        %319 = vmatprep.subr.mxu0 0.0
        %320 = vmatpush1.msra.mxu0 0.0
        %321 = vmatprep.subr.mxu0 0.0
        %322 = vmatpush1.msra.mxu0 0.0
        %323 = vmatprep.subr.mxu0 0.0
        %324 = vmatpush1.msra.mxu0 0.0
        %325 = vmatprep.subr.mxu0 0.0
        %326 = vmatpush1.msra.mxu0 0.0
        %327 = vmatprep.subr.mxu0 0.0
        %328 = vmatpush1.msra.mxu0 0.0
        %329 = vmatprep.subr.mxu0 0.0
        %330 = vmatpush1.msra.mxu0 0.0
        %331 = vmatprep.subr.mxu0 0.0
        %332 = vmatpush1.msra.mxu0 0.0
        %333 = vmatprep.subr.mxu0 0.0
        %334 = vmatpush1.msra.mxu0 0.0
        %335 = vmatprep.subr.mxu0 0.0
        %336 = vmatpush1.msra.mxu0 0.0
        %337 = vmatprep.subr.mxu0 0.0
        %338 = vmatpush1.msra.mxu0 0.0
        %339 = vmatprep.subr.mxu0 0.0
        %340 = vmatpush1.msra.mxu0 0.0
        %341 = vmatprep.subr.mxu0 0.0
        %342 = vmatpush1.msra.mxu0 0.0
        %343 = vmatprep.subr.mxu0 0.0
        %344 = vmatpush1.msra.mxu0 0.0
        %345 = vmatprep.subr.mxu0 0.0
        %346 = vmatpush1.msra.mxu0 0.0
        %347 = vmatprep.subr.mxu0 0.0
        %348 = vmatpush1.msra.mxu0 0.0
        %349 = vmatprep.subr.mxu0 0.0
        %350 = vmatpush1.msra.mxu0 0.0
        %351 = vmatprep.subr.mxu0 0.0
        %352 = vmatpush1.msra.mxu0 0.0
        %353 = vmatprep.subr.mxu0 0.0
        %354 = vmatpush1.msra.mxu0 0.0
        %355 = vmatprep.subr.mxu0 0.0
        %356 = vmatpush1.msra.mxu0 0.0
        %357 = vmatprep.subr.mxu0 0.0
        %358 = vmatpush1.msra.mxu0 0.0
        %359 = vmatprep.subr.mxu0 0.0
        %360 = vmatpush1.msra.mxu0 0.0
        %361 = vmatprep.subr.mxu0 0.0
        %362 = vmatpush1.msra.mxu0 0.0
        %363 = vmatprep.subr.mxu0 0.0
        %364 = vmatpush1.msra.mxu0 0.0
        %365 = vmatprep.mubr.f32.mxu0 0.0
        %366 = vmatmul.mubr.f32.gmra.mrb[0].mxu0 %v296
        %v367 = vpop.f32.mrb[0].mxu0
        %v368 = vadd.f32 0.0, %v367
        %v369 = vpop.f32.mrb[0].mxu0
        %370 = vmatprep.mubr.f32.mxu0 0.0
        %371 = vmatmul.mubr.f32.gmra.mrb[0].mxu0 %v299
        %v372 = vpop.f32.mrb[0].mxu0
        %v373 = vadd.f32 0.0, %v372
        %v374 = vpop.f32.mrb[0].mxu0
        %375 = vdwg.mxu0
        %v377 = vsel %vm294, %v290, 0
        %v380 = vsel %vm294, %v291, 0
        %382 = vmatprep.subr.mxu0 0.0
        %383 = vmatpush1.msra.mxu0 %v368
        %384 = vmatprep.subr.mxu0 0.0
        %385 = vmatpush1.msra.mxu0 %v373
        %386 = vmatprep.subr.mxu0 0.0
        %387 = vmatpush1.msra.mxu0 0.0
        %388 = vmatprep.subr.mxu0 0.0
        %389 = vmatpush1.msra.mxu0 0.0
        %390 = vmatprep.subr.mxu0 0.0
        %391 = vmatpush1.msra.mxu0 0.0
        %392 = vmatprep.subr.mxu0 0.0
        %393 = vmatpush1.msra.mxu0 0.0
        %394 = vmatprep.subr.mxu0 0.0
        %395 = vmatpush1.msra.mxu0 0.0
        %396 = vmatprep.subr.mxu0 0.0
        %397 = vmatpush1.msra.mxu0 0.0
        %398 = vmatprep.subr.mxu0 0.0
        %399 = vmatpush1.msra.mxu0 0.0
        %400 = vmatprep.subr.mxu0 0.0
        %401 = vmatpush1.msra.mxu0 0.0
        %402 = vmatprep.subr.mxu0 0.0
        %403 = vmatpush1.msra.mxu0 0.0
        %404 = vmatprep.subr.mxu0 0.0
        %405 = vmatpush1.msra.mxu0 0.0
        %406 = vmatprep.subr.mxu0 0.0
        %407 = vmatpush1.msra.mxu0 0.0
        %408 = vmatprep.subr.mxu0 0.0
        %409 = vmatpush1.msra.mxu0 0.0
        %410 = vmatprep.subr.mxu0 0.0
        %411 = vmatpush1.msra.mxu0 0.0
        %412 = vmatprep.subr.mxu0 0.0
        %413 = vmatpush1.msra.mxu0 0.0
        %414 = vmatprep.subr.mxu0 0.0
        %415 = vmatpush1.msra.mxu0 0.0
        %416 = vmatprep.subr.mxu0 0.0
        %417 = vmatpush1.msra.mxu0 0.0
        %418 = vmatprep.subr.mxu0 0.0
        %419 = vmatpush1.msra.mxu0 0.0
        %420 = vmatprep.subr.mxu0 0.0
        %421 = vmatpush1.msra.mxu0 0.0
        %422 = vmatprep.subr.mxu0 0.0
        %423 = vmatpush1.msra.mxu0 0.0
        %424 = vmatprep.subr.mxu0 0.0
        %425 = vmatpush1.msra.mxu0 0.0
        %426 = vmatprep.subr.mxu0 0.0
        %427 = vmatpush1.msra.mxu0 0.0
        %428 = vmatprep.subr.mxu0 0.0
        %429 = vmatpush1.msra.mxu0 0.0
        %430 = vmatprep.subr.mxu0 0.0
        %431 = vmatpush1.msra.mxu0 0.0
        %432 = vmatprep.subr.mxu0 0.0
        %433 = vmatpush1.msra.mxu0 0.0
        %434 = vmatprep.subr.mxu0 0.0
        %435 = vmatpush1.msra.mxu0 0.0
        %436 = vmatprep.subr.mxu0 0.0
        %437 = vmatpush1.msra.mxu0 0.0
        %438 = vmatprep.subr.mxu0 0.0
        %439 = vmatpush1.msra.mxu0 0.0
        %440 = vmatprep.subr.mxu0 0.0
        %441 = vmatpush1.msra.mxu0 0.0
        %442 = vmatprep.subr.mxu0 0.0
        %443 = vmatpush1.msra.mxu0 0.0
        %444 = vmatprep.subr.mxu0 0.0
        %445 = vmatpush1.msra.mxu0 0.0
        %446 = vmatprep.mubr.f32.mxu0 0.0
        %447 = vmatmul.mubr.f32.gmra.mrb[0].mxu0 %v377
        %v448 = vpop.f32.mrb[0].mxu0
        %v449 = vadd.f32 0.0, %v448
        %v450 = vpop.f32.mrb[0].mxu0
        %451 = vmatprep.mubr.f32.mxu0 0.0
        %452 = vmatmul.mubr.f32.gmra.mrb[0].mxu0 %v380
        %v453 = vpop.f32.mrb[0].mxu0
        %v454 = vadd.f32 0.0, %v453
        %v455 = vpop.f32.mrb[0].mxu0
        %456 = vdwg.mxu0
        %v458 = vsel %vm294, %v286, 0
        %v461 = vsel %vm294, %v287, 0
        %463 = vmatprep.subr.mxu0 0.0
        %464 = vmatpush1.msra.mxu0 %v288
        %465 = vmatprep.subr.mxu0 0.0
        %466 = vmatpush1.msra.mxu0 %v289
        %467 = vmatprep.subr.mxu0 0.0
        %468 = vmatpush1.msra.mxu0 0.0
        %469 = vmatprep.subr.mxu0 0.0
        %470 = vmatpush1.msra.mxu0 0.0
        %471 = vmatprep.subr.mxu0 0.0
        %472 = vmatpush1.msra.mxu0 0.0
        %473 = vmatprep.subr.mxu0 0.0
        %474 = vmatpush1.msra.mxu0 0.0
        %475 = vmatprep.subr.mxu0 0.0
        %476 = vmatpush1.msra.mxu0 0.0
        %477 = vmatprep.subr.mxu0 0.0
        %478 = vmatpush1.msra.mxu0 0.0
        %479 = vmatprep.subr.mxu0 0.0
        %480 = vmatpush1.msra.mxu0 0.0
        %481 = vmatprep.subr.mxu0 0.0
        %482 = vmatpush1.msra.mxu0 0.0
        %483 = vmatprep.subr.mxu0 0.0
        %484 = vmatpush1.msra.mxu0 0.0
        %485 = vmatprep.subr.mxu0 0.0
        %486 = vmatpush1.msra.mxu0 0.0
        %487 = vmatprep.subr.mxu0 0.0
        %488 = vmatpush1.msra.mxu0 0.0
        %489 = vmatprep.subr.mxu0 0.0
        %490 = vmatpush1.msra.mxu0 0.0
        %491 = vmatprep.subr.mxu0 0.0
        %492 = vmatpush1.msra.mxu0 0.0
        %493 = vmatprep.subr.mxu0 0.0
        %494 = vmatpush1.msra.mxu0 0.0
        %495 = vmatprep.subr.mxu0 0.0
        %496 = vmatpush1.msra.mxu0 0.0
        %497 = vmatprep.subr.mxu0 0.0
        %498 = vmatpush1.msra.mxu0 0.0
        %499 = vmatprep.subr.mxu0 0.0
        %500 = vmatpush1.msra.mxu0 0.0
        %501 = vmatprep.subr.mxu0 0.0
        %502 = vmatpush1.msra.mxu0 0.0
        %503 = vmatprep.subr.mxu0 0.0
        %504 = vmatpush1.msra.mxu0 0.0
        %505 = vmatprep.subr.mxu0 0.0
        %506 = vmatpush1.msra.mxu0 0.0
        %507 = vmatprep.subr.mxu0 0.0
        %508 = vmatpush1.msra.mxu0 0.0
        %509 = vmatprep.subr.mxu0 0.0
        %510 = vmatpush1.msra.mxu0 0.0
        %511 = vmatprep.subr.mxu0 0.0
        %512 = vmatpush1.msra.mxu0 0.0
        %513 = vmatprep.subr.mxu0 0.0
        %514 = vmatpush1.msra.mxu0 0.0
        %515 = vmatprep.subr.mxu0 0.0
        %516 = vmatpush1.msra.mxu0 0.0
        %517 = vmatprep.subr.mxu0 0.0
        %518 = vmatpush1.msra.mxu0 0.0
        %519 = vmatprep.subr.mxu0 0.0
        %520 = vmatpush1.msra.mxu0 0.0
        %521 = vmatprep.subr.mxu0 0.0
        %522 = vmatpush1.msra.mxu0 0.0
        %523 = vmatprep.subr.mxu0 0.0
        %524 = vmatpush1.msra.mxu0 0.0
        %525 = vmatprep.subr.mxu0 0.0
        %526 = vmatpush1.msra.mxu0 0.0
        %527 = vmatprep.mubr.f32.mxu0 0.0
        %528 = vmatmul.mubr.f32.gmra.mrb[0].mxu0 %v458
        %v529 = vpop.f32.mrb[0].mxu0
        %v530 = vadd.f32 0.0, %v529
        %v531 = vpop.f32.mrb[0].mxu0
        %532 = vmatprep.mubr.f32.mxu0 0.0
        %533 = vmatmul.mubr.f32.gmra.mrb[0].mxu0 %v461
        %v534 = vpop.f32.mrb[0].mxu0
        %v535 = vadd.f32 0.0, %v534
        %v536 = vpop.f32.mrb[0].mxu0
        %537 = vdwg.mxu0
        %538 = vmatprep.subr.mxu0 0.0
        %539 = vmatpush1.msra.mxu0 %v530
        %540 = vmatprep.subr.mxu0 0.0
        %541 = vmatpush1.msra.mxu0 %v535
        %542 = vmatprep.subr.mxu0 0.0
        %543 = vmatpush1.msra.mxu0 0.0
        %544 = vmatprep.subr.mxu0 0.0
        %545 = vmatpush1.msra.mxu0 0.0
        %546 = vmatprep.subr.mxu0 0.0
        %547 = vmatpush1.msra.mxu0 0.0
        %548 = vmatprep.subr.mxu0 0.0
        %549 = vmatpush1.msra.mxu0 0.0
        %550 = vmatprep.subr.mxu0 0.0
        %551 = vmatpush1.msra.mxu0 0.0
        %552 = vmatprep.subr.mxu0 0.0
        %553 = vmatpush1.msra.mxu0 0.0
        %554 = vmatprep.subr.mxu0 0.0
        %555 = vmatpush1.msra.mxu0 0.0
        %556 = vmatprep.subr.mxu0 0.0
        %557 = vmatpush1.msra.mxu0 0.0
        %558 = vmatprep.subr.mxu0 0.0
        %559 = vmatpush1.msra.mxu0 0.0
        %560 = vmatprep.subr.mxu0 0.0
        %561 = vmatpush1.msra.mxu0 0.0
        %562 = vmatprep.subr.mxu0 0.0
        %563 = vmatpush1.msra.mxu0 0.0
        %564 = vmatprep.subr.mxu0 0.0
        %565 = vmatpush1.msra.mxu0 0.0
        %566 = vmatprep.subr.mxu0 0.0
        %567 = vmatpush1.msra.mxu0 0.0
        %568 = vmatprep.subr.mxu0 0.0
        %569 = vmatpush1.msra.mxu0 0.0
        %570 = vmatprep.subr.mxu0 0.0
        %571 = vmatpush1.msra.mxu0 0.0
        %572 = vmatprep.subr.mxu0 0.0
        %573 = vmatpush1.msra.mxu0 0.0
        %574 = vmatprep.subr.mxu0 0.0
        %575 = vmatpush1.msra.mxu0 0.0
        %576 = vmatprep.subr.mxu0 0.0
        %577 = vmatpush1.msra.mxu0 0.0
        %578 = vmatprep.subr.mxu0 0.0
        %579 = vmatpush1.msra.mxu0 0.0
        %580 = vmatprep.subr.mxu0 0.0
        %581 = vmatpush1.msra.mxu0 0.0
        %582 = vmatprep.subr.mxu0 0.0
        %583 = vmatpush1.msra.mxu0 0.0
        %584 = vmatprep.subr.mxu0 0.0
        %585 = vmatpush1.msra.mxu0 0.0
        %586 = vmatprep.subr.mxu0 0.0
        %587 = vmatpush1.msra.mxu0 0.0
        %588 = vmatprep.subr.mxu0 0.0
        %589 = vmatpush1.msra.mxu0 0.0
        %590 = vmatprep.subr.mxu0 0.0
        %591 = vmatpush1.msra.mxu0 0.0
        %592 = vmatprep.subr.mxu0 0.0
        %593 = vmatpush1.msra.mxu0 0.0
        %594 = vmatprep.subr.mxu0 0.0
        %595 = vmatpush1.msra.mxu0 0.0
        %596 = vmatprep.subr.mxu0 0.0
        %597 = vmatpush1.msra.mxu0 0.0
        %598 = vmatprep.subr.mxu0 0.0
        %599 = vmatpush1.msra.mxu0 0.0
        %600 = vmatprep.subr.mxu0 0.0
        %601 = vmatpush1.msra.mxu0 0.0
        %602 = vmatprep.mubr.f32.mxu0 0.0
        %603 = vmatmul.mubr.f32.gmra.mrb[0].mxu0 %v377
        %v604 = vpop.f32.mrb[0].mxu0
        %v605 = vadd.f32 0.0, %v604
        %v606 = vpop.f32.mrb[0].mxu0
        %607 = vmatprep.mubr.f32.mxu0 0.0
        %608 = vmatmul.mubr.f32.gmra.mrb[0].mxu0 %v380
        %v609 = vpop.f32.mrb[0].mxu0
        %v610 = vadd.f32 0.0, %v609
        %v611 = vpop.f32.mrb[0].mxu0
        %612 = vdwg.mxu0
        %v613 = vmul.f32 %v284, %v284
        %v614 = vmul.f32 %v285, %v285
        %v616 = vsel %vm294, %v613, 0
        %v619 = vsel %vm294, %v614, 0
        %621 = vmatprep.subr.mxu0 0.0
        %622 = vmatpush1.msra.mxu0 %v288
        %623 = vmatprep.subr.mxu0 0.0
        %624 = vmatpush1.msra.mxu0 %v289
        %625 = vmatprep.subr.mxu0 0.0
        %626 = vmatpush1.msra.mxu0 0.0
        %627 = vmatprep.subr.mxu0 0.0
        %628 = vmatpush1.msra.mxu0 0.0
        %629 = vmatprep.subr.mxu0 0.0
        %630 = vmatpush1.msra.mxu0 0.0
        %631 = vmatprep.subr.mxu0 0.0
        %632 = vmatpush1.msra.mxu0 0.0
        %633 = vmatprep.subr.mxu0 0.0
        %634 = vmatpush1.msra.mxu0 0.0
        %635 = vmatprep.subr.mxu0 0.0
        %636 = vmatpush1.msra.mxu0 0.0
        %637 = vmatprep.subr.mxu0 0.0
        %638 = vmatpush1.msra.mxu0 0.0
        %639 = vmatprep.subr.mxu0 0.0
        %640 = vmatpush1.msra.mxu0 0.0
        %641 = vmatprep.subr.mxu0 0.0
        %642 = vmatpush1.msra.mxu0 0.0
        %643 = vmatprep.subr.mxu0 0.0
        %644 = vmatpush1.msra.mxu0 0.0
        %645 = vmatprep.subr.mxu0 0.0
        %646 = vmatpush1.msra.mxu0 0.0
        %647 = vmatprep.subr.mxu0 0.0
        %648 = vmatpush1.msra.mxu0 0.0
        %649 = vmatprep.subr.mxu0 0.0
        %650 = vmatpush1.msra.mxu0 0.0
        %651 = vmatprep.subr.mxu0 0.0
        %652 = vmatpush1.msra.mxu0 0.0
        %653 = vmatprep.subr.mxu0 0.0
        %654 = vmatpush1.msra.mxu0 0.0
        %655 = vmatprep.subr.mxu0 0.0
        %656 = vmatpush1.msra.mxu0 0.0
        %657 = vmatprep.subr.mxu0 0.0
        %658 = vmatpush1.msra.mxu0 0.0
        %659 = vmatprep.subr.mxu0 0.0
        %660 = vmatpush1.msra.mxu0 0.0
        %661 = vmatprep.subr.mxu0 0.0
        %662 = vmatpush1.msra.mxu0 0.0
        %663 = vmatprep.subr.mxu0 0.0
        %664 = vmatpush1.msra.mxu0 0.0
        %665 = vmatprep.subr.mxu0 0.0
        %666 = vmatpush1.msra.mxu0 0.0
        %667 = vmatprep.subr.mxu0 0.0
        %668 = vmatpush1.msra.mxu0 0.0
        %669 = vmatprep.subr.mxu0 0.0
        %670 = vmatpush1.msra.mxu0 0.0
        %671 = vmatprep.subr.mxu0 0.0
        %672 = vmatpush1.msra.mxu0 0.0
        %673 = vmatprep.subr.mxu0 0.0
        %674 = vmatpush1.msra.mxu0 0.0
        %675 = vmatprep.subr.mxu0 0.0
        %676 = vmatpush1.msra.mxu0 0.0
        %677 = vmatprep.subr.mxu0 0.0
        %678 = vmatpush1.msra.mxu0 0.0
        %679 = vmatprep.subr.mxu0 0.0
        %680 = vmatpush1.msra.mxu0 0.0
        %681 = vmatprep.subr.mxu0 0.0
        %682 = vmatpush1.msra.mxu0 0.0
        %683 = vmatprep.subr.mxu0 0.0
        %684 = vmatpush1.msra.mxu0 0.0
        %685 = vmatprep.mubr.f32.mxu0 0.0
        %686 = vmatmul.mubr.f32.gmra.mrb[0].mxu0 %v616
        %v687 = vpop.f32.mrb[0].mxu0
        %v688 = vadd.f32 0.0, %v687
        %v689 = vpop.f32.mrb[0].mxu0
        %690 = vmatprep.mubr.f32.mxu0 0.0
        %691 = vmatmul.mubr.f32.gmra.mrb[0].mxu0 %v619
        %v692 = vpop.f32.mrb[0].mxu0
        %v693 = vadd.f32 0.0, %v692
        %v694 = vpop.f32.mrb[0].mxu0
        %695 = vdwg.mxu0
        %696 = vmatprep.subr.mxu0 0.0
        %697 = vmatpush1.msra.mxu0 %v688
        %698 = vmatprep.subr.mxu0 0.0
        %699 = vmatpush1.msra.mxu0 %v693
        %700 = vmatprep.subr.mxu0 0.0
        %701 = vmatpush1.msra.mxu0 0.0
        %702 = vmatprep.subr.mxu0 0.0
        %703 = vmatpush1.msra.mxu0 0.0
        %704 = vmatprep.subr.mxu0 0.0
        %705 = vmatpush1.msra.mxu0 0.0
        %706 = vmatprep.subr.mxu0 0.0
        %707 = vmatpush1.msra.mxu0 0.0
        %708 = vmatprep.subr.mxu0 0.0
        %709 = vmatpush1.msra.mxu0 0.0
        %710 = vmatprep.subr.mxu0 0.0
        %711 = vmatpush1.msra.mxu0 0.0
        %712 = vmatprep.subr.mxu0 0.0
        %713 = vmatpush1.msra.mxu0 0.0
        %714 = vmatprep.subr.mxu0 0.0
        %715 = vmatpush1.msra.mxu0 0.0
        %716 = vmatprep.subr.mxu0 0.0
        %717 = vmatpush1.msra.mxu0 0.0
        %718 = vmatprep.subr.mxu0 0.0
        %719 = vmatpush1.msra.mxu0 0.0
        %720 = vmatprep.subr.mxu0 0.0
        %721 = vmatpush1.msra.mxu0 0.0
        %722 = vmatprep.subr.mxu0 0.0
        %723 = vmatpush1.msra.mxu0 0.0
        %724 = vmatprep.subr.mxu0 0.0
        %725 = vmatpush1.msra.mxu0 0.0
        %726 = vmatprep.subr.mxu0 0.0
        %727 = vmatpush1.msra.mxu0 0.0
        %728 = vmatprep.subr.mxu0 0.0
        %729 = vmatpush1.msra.mxu0 0.0
        %730 = vmatprep.subr.mxu0 0.0
        %731 = vmatpush1.msra.mxu0 0.0
        %732 = vmatprep.subr.mxu0 0.0
        %733 = vmatpush1.msra.mxu0 0.0
        %734 = vmatprep.subr.mxu0 0.0
        %735 = vmatpush1.msra.mxu0 0.0
        %736 = vmatprep.subr.mxu0 0.0
        %737 = vmatpush1.msra.mxu0 0.0
        %738 = vmatprep.subr.mxu0 0.0
        %739 = vmatpush1.msra.mxu0 0.0
        %740 = vmatprep.subr.mxu0 0.0
        %741 = vmatpush1.msra.mxu0 0.0
        %742 = vmatprep.subr.mxu0 0.0
        %743 = vmatpush1.msra.mxu0 0.0
        %744 = vmatprep.subr.mxu0 0.0
        %745 = vmatpush1.msra.mxu0 0.0
        %746 = vmatprep.subr.mxu0 0.0
        %747 = vmatpush1.msra.mxu0 0.0
        %748 = vmatprep.subr.mxu0 0.0
        %749 = vmatpush1.msra.mxu0 0.0
        %750 = vmatprep.subr.mxu0 0.0
        %751 = vmatpush1.msra.mxu0 0.0
        %752 = vmatprep.subr.mxu0 0.0
        %753 = vmatpush1.msra.mxu0 0.0
        %754 = vmatprep.subr.mxu0 0.0
        %755 = vmatpush1.msra.mxu0 0.0
        %756 = vmatprep.subr.mxu0 0.0
        %757 = vmatpush1.msra.mxu0 0.0
        %758 = vmatprep.subr.mxu0 0.0
        %759 = vmatpush1.msra.mxu0 0.0
        %760 = vmatprep.mubr.f32.mxu0 0.0
        %761 = vmatmul.mubr.f32.gmra.mrb[0].mxu0 %v377
        %v762 = vpop.f32.mrb[0].mxu0
        %v763 = vadd.f32 0.0, %v762
        %v764 = vpop.f32.mrb[0].mxu0
        %765 = vmatprep.mubr.f32.mxu0 0.0
        %766 = vmatmul.mubr.f32.gmra.mrb[0].mxu0 %v380
        %v767 = vpop.f32.mrb[0].mxu0
        %v768 = vadd.f32 0.0, %v767
        %v769 = vpop.f32.mrb[0].mxu0
        %770 = vdwg.mxu0
        %v771 = vmul.f32 %v286, %v286
        %v772 = vmul.f32 %v287, %v287
        %v774 = vsel %vm294, %v771, 0
        %v777 = vsel %vm294, %v772, 0
        %779 = vmatprep.subr.mxu0 0.0
        %780 = vmatpush1.msra.mxu0 %v288
        %781 = vmatprep.subr.mxu0 0.0
        %782 = vmatpush1.msra.mxu0 %v289
        %783 = vmatprep.subr.mxu0 0.0
        %784 = vmatpush1.msra.mxu0 0.0
        %785 = vmatprep.subr.mxu0 0.0
        %786 = vmatpush1.msra.mxu0 0.0
        %787 = vmatprep.subr.mxu0 0.0
        %788 = vmatpush1.msra.mxu0 0.0
        %789 = vmatprep.subr.mxu0 0.0
        %790 = vmatpush1.msra.mxu0 0.0
        %791 = vmatprep.subr.mxu0 0.0
        %792 = vmatpush1.msra.mxu0 0.0
        %793 = vmatprep.subr.mxu0 0.0
        %794 = vmatpush1.msra.mxu0 0.0
        %795 = vmatprep.subr.mxu0 0.0
        %796 = vmatpush1.msra.mxu0 0.0
        %797 = vmatprep.subr.mxu0 0.0
        %798 = vmatpush1.msra.mxu0 0.0
        %799 = vmatprep.subr.mxu0 0.0
        %800 = vmatpush1.msra.mxu0 0.0
        %801 = vmatprep.subr.mxu0 0.0
        %802 = vmatpush1.msra.mxu0 0.0
        %803 = vmatprep.subr.mxu0 0.0
        %804 = vmatpush1.msra.mxu0 0.0
        %805 = vmatprep.subr.mxu0 0.0
        %806 = vmatpush1.msra.mxu0 0.0
        %807 = vmatprep.subr.mxu0 0.0
        %808 = vmatpush1.msra.mxu0 0.0
        %809 = vmatprep.subr.mxu0 0.0
        %810 = vmatpush1.msra.mxu0 0.0
        %811 = vmatprep.subr.mxu0 0.0
        %812 = vmatpush1.msra.mxu0 0.0
        %813 = vmatprep.subr.mxu0 0.0
        %814 = vmatpush1.msra.mxu0 0.0
        %815 = vmatprep.subr.mxu0 0.0
        %816 = vmatpush1.msra.mxu0 0.0
        %817 = vmatprep.subr.mxu0 0.0
        %818 = vmatpush1.msra.mxu0 0.0
        %819 = vmatprep.subr.mxu0 0.0
        %820 = vmatpush1.msra.mxu0 0.0
        %821 = vmatprep.subr.mxu0 0.0
        %822 = vmatpush1.msra.mxu0 0.0
        %823 = vmatprep.subr.mxu0 0.0
        %824 = vmatpush1.msra.mxu0 0.0
        %825 = vmatprep.subr.mxu0 0.0
        %826 = vmatpush1.msra.mxu0 0.0
        %827 = vmatprep.subr.mxu0 0.0
        %828 = vmatpush1.msra.mxu0 0.0
        %829 = vmatprep.subr.mxu0 0.0
        %830 = vmatpush1.msra.mxu0 0.0
        %831 = vmatprep.subr.mxu0 0.0
        %832 = vmatpush1.msra.mxu0 0.0
        %833 = vmatprep.subr.mxu0 0.0
        %834 = vmatpush1.msra.mxu0 0.0
        %835 = vmatprep.subr.mxu0 0.0
        %836 = vmatpush1.msra.mxu0 0.0
        %837 = vmatprep.subr.mxu0 0.0
        %838 = vmatpush1.msra.mxu0 0.0
        %839 = vmatprep.subr.mxu0 0.0
        %840 = vmatpush1.msra.mxu0 0.0
        %841 = vmatprep.subr.mxu0 0.0
        %842 = vmatpush1.msra.mxu0 0.0
        %843 = vmatprep.mubr.f32.mxu0 0.0
        %844 = vmatmul.mubr.f32.gmra.mrb[0].mxu0 %v774
        %v845 = vpop.f32.mrb[0].mxu0
        %v846 = vadd.f32 0.0, %v845
        %v847 = vpop.f32.mrb[0].mxu0
        %848 = vmatprep.mubr.f32.mxu0 0.0
        %849 = vmatmul.mubr.f32.gmra.mrb[0].mxu0 %v777
        %v850 = vpop.f32.mrb[0].mxu0
        %v851 = vadd.f32 0.0, %v850
        %v852 = vpop.f32.mrb[0].mxu0
        %853 = vdwg.mxu0
        %854 = vmatprep.subr.mxu0 0.0
        %855 = vmatpush1.msra.mxu0 %v846
        %856 = vmatprep.subr.mxu0 0.0
        %857 = vmatpush1.msra.mxu0 %v851
        %858 = vmatprep.subr.mxu0 0.0
        %859 = vmatpush1.msra.mxu0 0.0
        %860 = vmatprep.subr.mxu0 0.0
        %861 = vmatpush1.msra.mxu0 0.0
        %862 = vmatprep.subr.mxu0 0.0
        %863 = vmatpush1.msra.mxu0 0.0
        %864 = vmatprep.subr.mxu0 0.0
        %865 = vmatpush1.msra.mxu0 0.0
        %866 = vmatprep.subr.mxu0 0.0
        %867 = vmatpush1.msra.mxu0 0.0
        %868 = vmatprep.subr.mxu0 0.0
        %869 = vmatpush1.msra.mxu0 0.0
        %870 = vmatprep.subr.mxu0 0.0
        %871 = vmatpush1.msra.mxu0 0.0
        %872 = vmatprep.subr.mxu0 0.0
        %873 = vmatpush1.msra.mxu0 0.0
        %874 = vmatprep.subr.mxu0 0.0
        %875 = vmatpush1.msra.mxu0 0.0
        %876 = vmatprep.subr.mxu0 0.0
        %877 = vmatpush1.msra.mxu0 0.0
        %878 = vmatprep.subr.mxu0 0.0
        %879 = vmatpush1.msra.mxu0 0.0
        %880 = vmatprep.subr.mxu0 0.0
        %881 = vmatpush1.msra.mxu0 0.0
        %882 = vmatprep.subr.mxu0 0.0
        %883 = vmatpush1.msra.mxu0 0.0
        %884 = vmatprep.subr.mxu0 0.0
        %885 = vmatpush1.msra.mxu0 0.0
        %886 = vmatprep.subr.mxu0 0.0
        %887 = vmatpush1.msra.mxu0 0.0
        %888 = vmatprep.subr.mxu0 0.0
        %889 = vmatpush1.msra.mxu0 0.0
        %890 = vmatprep.subr.mxu0 0.0
        %891 = vmatpush1.msra.mxu0 0.0
        %892 = vmatprep.subr.mxu0 0.0
        %893 = vmatpush1.msra.mxu0 0.0
        %894 = vmatprep.subr.mxu0 0.0
        %895 = vmatpush1.msra.mxu0 0.0
        %896 = vmatprep.subr.mxu0 0.0
        %897 = vmatpush1.msra.mxu0 0.0
        %898 = vmatprep.subr.mxu0 0.0
        %899 = vmatpush1.msra.mxu0 0.0
        %900 = vmatprep.subr.mxu0 0.0
        %901 = vmatpush1.msra.mxu0 0.0
        %902 = vmatprep.subr.mxu0 0.0
        %903 = vmatpush1.msra.mxu0 0.0
        %904 = vmatprep.subr.mxu0 0.0
        %905 = vmatpush1.msra.mxu0 0.0
        %906 = vmatprep.subr.mxu0 0.0
        %907 = vmatpush1.msra.mxu0 0.0
        %908 = vmatprep.subr.mxu0 0.0
        %909 = vmatpush1.msra.mxu0 0.0
        %910 = vmatprep.subr.mxu0 0.0
        %911 = vmatpush1.msra.mxu0 0.0
        %912 = vmatprep.subr.mxu0 0.0
        %913 = vmatpush1.msra.mxu0 0.0
        %914 = vmatprep.subr.mxu0 0.0
        %915 = vmatpush1.msra.mxu0 0.0
        %916 = vmatprep.subr.mxu0 0.0
        %917 = vmatpush1.msra.mxu0 0.0
        %918 = vmatprep.mubr.f32.mxu0 0.0
        %919 = vmatmul.mubr.f32.gmra.mrb[0].mxu0 %v377
        %v920 = vpop.f32.mrb[0].mxu0
        %v921 = vadd.f32 0.0, %v920
        %v922 = vpop.f32.mrb[0].mxu0
        %923 = vmatprep.mubr.f32.mxu0 0.0
        %924 = vmatmul.mubr.f32.gmra.mrb[0].mxu0 %v380
        %v925 = vpop.f32.mrb[0].mxu0
        %v926 = vadd.f32 0.0, %v925
        %v927 = vpop.f32.mrb[0].mxu0
        %928 = vdwg.mxu0
        %v930 = vsel %vm294, %v292, 0
        %v933 = vsel %vm294, %v293, 0
        %935 = vmatprep.subr.mxu0 0.0
        %936 = vmatpush1.msra.mxu0 %v288
        %937 = vmatprep.subr.mxu0 0.0
        %938 = vmatpush1.msra.mxu0 %v289
        %939 = vmatprep.subr.mxu0 0.0
        %940 = vmatpush1.msra.mxu0 0.0
        %941 = vmatprep.subr.mxu0 0.0
        %942 = vmatpush1.msra.mxu0 0.0
        %943 = vmatprep.subr.mxu0 0.0
        %944 = vmatpush1.msra.mxu0 0.0
        %945 = vmatprep.subr.mxu0 0.0
        %946 = vmatpush1.msra.mxu0 0.0
        %947 = vmatprep.subr.mxu0 0.0
        %948 = vmatpush1.msra.mxu0 0.0
        %949 = vmatprep.subr.mxu0 0.0
        %950 = vmatpush1.msra.mxu0 0.0
        %951 = vmatprep.subr.mxu0 0.0
        %952 = vmatpush1.msra.mxu0 0.0
        %953 = vmatprep.subr.mxu0 0.0
        %954 = vmatpush1.msra.mxu0 0.0
        %955 = vmatprep.subr.mxu0 0.0
        %956 = vmatpush1.msra.mxu0 0.0
        %957 = vmatprep.subr.mxu0 0.0
        %958 = vmatpush1.msra.mxu0 0.0
        %959 = vmatprep.subr.mxu0 0.0
        %960 = vmatpush1.msra.mxu0 0.0
        %961 = vmatprep.subr.mxu0 0.0
        %962 = vmatpush1.msra.mxu0 0.0
        %963 = vmatprep.subr.mxu0 0.0
        %964 = vmatpush1.msra.mxu0 0.0
        %965 = vmatprep.subr.mxu0 0.0
        %966 = vmatpush1.msra.mxu0 0.0
        %967 = vmatprep.subr.mxu0 0.0
        %968 = vmatpush1.msra.mxu0 0.0
        %969 = vmatprep.subr.mxu0 0.0
        %970 = vmatpush1.msra.mxu0 0.0
        %971 = vmatprep.subr.mxu0 0.0
        %972 = vmatpush1.msra.mxu0 0.0
        %973 = vmatprep.subr.mxu0 0.0
        %974 = vmatpush1.msra.mxu0 0.0
        %975 = vmatprep.subr.mxu0 0.0
        %976 = vmatpush1.msra.mxu0 0.0
        %977 = vmatprep.subr.mxu0 0.0
        %978 = vmatpush1.msra.mxu0 0.0
        %979 = vmatprep.subr.mxu0 0.0
        %980 = vmatpush1.msra.mxu0 0.0
        %981 = vmatprep.subr.mxu0 0.0
        %982 = vmatpush1.msra.mxu0 0.0
        %983 = vmatprep.subr.mxu0 0.0
        %984 = vmatpush1.msra.mxu0 0.0
        %985 = vmatprep.subr.mxu0 0.0
        %986 = vmatpush1.msra.mxu0 0.0
        %987 = vmatprep.subr.mxu0 0.0
        %988 = vmatpush1.msra.mxu0 0.0
        %989 = vmatprep.subr.mxu0 0.0
        %990 = vmatpush1.msra.mxu0 0.0
        %991 = vmatprep.subr.mxu0 0.0
        %992 = vmatpush1.msra.mxu0 0.0
        %993 = vmatprep.subr.mxu0 0.0
        %994 = vmatpush1.msra.mxu0 0.0
        %995 = vmatprep.subr.mxu0 0.0
        %996 = vmatpush1.msra.mxu0 0.0
        %997 = vmatprep.subr.mxu0 0.0
        %998 = vmatpush1.msra.mxu0 0.0
        %999 = vmatprep.mubr.f32.mxu0 0.0
        %1000 = vmatmul.mubr.f32.gmra.mrb[0].mxu0 %v930
        %v1001 = vpop.f32.mrb[0].mxu0
        %v1002 = vadd.f32 0.0, %v1001
        %v1003 = vpop.f32.mrb[0].mxu0
        %1004 = vmatprep.mubr.f32.mxu0 0.0
        %1005 = vmatmul.mubr.f32.gmra.mrb[0].mxu0 %v933
        %v1006 = vpop.f32.mrb[0].mxu0
        %v1007 = vadd.f32 0.0, %v1006
        %v1008 = vpop.f32.mrb[0].mxu0
        %1009 = vdwg.mxu0
        %1010 = vmatprep.subr.mxu0 0.0
        %1011 = vmatpush1.msra.mxu0 %v1002
        %1012 = vmatprep.subr.mxu0 0.0
        %1013 = vmatpush1.msra.mxu0 %v1007
        %1014 = vmatprep.subr.mxu0 0.0
        %1015 = vmatpush1.msra.mxu0 0.0
        %1016 = vmatprep.subr.mxu0 0.0
        %1017 = vmatpush1.msra.mxu0 0.0
        %1018 = vmatprep.subr.mxu0 0.0
        %1019 = vmatpush1.msra.mxu0 0.0
        %1020 = vmatprep.subr.mxu0 0.0
        %1021 = vmatpush1.msra.mxu0 0.0
        %1022 = vmatprep.subr.mxu0 0.0
        %1023 = vmatpush1.msra.mxu0 0.0
        %1024 = vmatprep.subr.mxu0 0.0
        %1025 = vmatpush1.msra.mxu0 0.0
        %1026 = vmatprep.subr.mxu0 0.0
        %1027 = vmatpush1.msra.mxu0 0.0
        %1028 = vmatprep.subr.mxu0 0.0
        %1029 = vmatpush1.msra.mxu0 0.0
        %1030 = vmatprep.subr.mxu0 0.0
        %1031 = vmatpush1.msra.mxu0 0.0
        %1032 = vmatprep.subr.mxu0 0.0
        %1033 = vmatpush1.msra.mxu0 0.0
        %1034 = vmatprep.subr.mxu0 0.0
        %1035 = vmatpush1.msra.mxu0 0.0
        %1036 = vmatprep.subr.mxu0 0.0
        %1037 = vmatpush1.msra.mxu0 0.0
        %1038 = vmatprep.subr.mxu0 0.0
        %1039 = vmatpush1.msra.mxu0 0.0
        %1040 = vmatprep.subr.mxu0 0.0
        %1041 = vmatpush1.msra.mxu0 0.0
        %1042 = vmatprep.subr.mxu0 0.0
        %1043 = vmatpush1.msra.mxu0 0.0
        %1044 = vmatprep.subr.mxu0 0.0
        %1045 = vmatpush1.msra.mxu0 0.0
        %1046 = vmatprep.subr.mxu0 0.0
        %1047 = vmatpush1.msra.mxu0 0.0
        %1048 = vmatprep.subr.mxu0 0.0
        %1049 = vmatpush1.msra.mxu0 0.0
        %1050 = vmatprep.subr.mxu0 0.0
        %1051 = vmatpush1.msra.mxu0 0.0
        %1052 = vmatprep.subr.mxu0 0.0
        %1053 = vmatpush1.msra.mxu0 0.0
        %1054 = vmatprep.subr.mxu0 0.0
        %1055 = vmatpush1.msra.mxu0 0.0
        %1056 = vmatprep.subr.mxu0 0.0
        %1057 = vmatpush1.msra.mxu0 0.0
        %1058 = vmatprep.subr.mxu0 0.0
        %1059 = vmatpush1.msra.mxu0 0.0
        %1060 = vmatprep.subr.mxu0 0.0
        %1061 = vmatpush1.msra.mxu0 0.0
        %1062 = vmatprep.subr.mxu0 0.0
        %1063 = vmatpush1.msra.mxu0 0.0
        %1064 = vmatprep.subr.mxu0 0.0
        %1065 = vmatpush1.msra.mxu0 0.0
        %1066 = vmatprep.subr.mxu0 0.0
        %1067 = vmatpush1.msra.mxu0 0.0
        %1068 = vmatprep.subr.mxu0 0.0
        %1069 = vmatpush1.msra.mxu0 0.0
        %1070 = vmatprep.subr.mxu0 0.0
        %1071 = vmatpush1.msra.mxu0 0.0
        %1072 = vmatprep.subr.mxu0 0.0
        %1073 = vmatpush1.msra.mxu0 0.0
        %1074 = vmatprep.mubr.f32.mxu0 0.0
        %1075 = vmatmul.mubr.f32.gmra.mrb[0].mxu0 %v377
        %v1076 = vpop.f32.mrb[0].mxu0
        %v1077 = vadd.f32 0.0, %v1076
        %v1078 = vpop.f32.mrb[0].mxu0
        %1079 = vmatprep.mubr.f32.mxu0 0.0
        %1080 = vmatmul.mubr.f32.gmra.mrb[0].mxu0 %v380
        %v1081 = vpop.f32.mrb[0].mxu0
        %v1082 = vadd.f32 0.0, %v1081
        %v1083 = vpop.f32.mrb[0].mxu0
        %1084 = vdwg.mxu0
        %v1085 = vmul.f32 %v449, %v449
        %v1086 = vmul.f32 %v454, %v454
        %v1087 = vmul.f32 %v605, %v605
        %v1088 = vmul.f32 %v610, %v610
        %v1089 = vmul.f32 %v449, %v605
        %v1090 = vmul.f32 %v454, %v610
        %v1091 = vsub.f32 %v763, %v1085
        %v1092 = vsub.f32 %v768, %v1086
        %v1093 = vsub.f32 %v921, %v1087
        %v1094 = vsub.f32 %v926, %v1088
        %v1095 = vsub.f32 %v1077, %v1089
        %v1096 = vsub.f32 %v1082, %v1090
        %v1097 = vmul.f32 %v1089, 2.0
        %v1098 = vmul.f32 %v1090, 2.0
        %v1099 = vadd.f32 %v1097, 0.0001
        %v1100 = vadd.f32 %v1098, 0.0001
        %v1101 = vmul.f32 %v1095, 2.0
        %v1102 = vmul.f32 %v1096, 2.0
        %v1103 = vadd.f32 %v1101, 0.0009
        %v1104 = vadd.f32 %v1102, 0.0009
        %v1105 = vmul.f32 %v1099, %v1103
        %v1106 = vmul.f32 %v1100, %v1104
        %v1107 = vadd.f32 %v1085, %v1087
        %v1108 = vadd.f32 %v1086, %v1088
        %v1109 = vadd.f32 %v1107, 0.0001
        %v1110 = vadd.f32 %v1108, 0.0001
        %v1111 = vadd.f32 %v1091, %v1093
        %v1112 = vadd.f32 %v1092, %v1094
        %v1113 = vadd.f32 %v1111, 0.0009
        %v1114 = vadd.f32 %v1112, 0.0009
        %v1115 = vmul.f32 %v1109, %v1113
        %v1116 = vmul.f32 %v1110, %v1114
        %v1117 = vrcp.pop %v1115
        %v1118 = vmul.f32 %v1105, %v1117
        %v1119 = vrcp.pop %v1116
        %v1120 = vmul.f32 %v1106, %v1119
        %v1121 = vlog2.pop %v284
        %v1122 = vmul.f32 %v1121, 0.6931472
        %v1123 = vlog2.pop %v285
        %v1124 = vmul.f32 %v1123, 0.6931472
        %v1125 = vmax.f32 %v1122, -100.0
        %v1126 = vmax.f32 %v1124, -100.0
        %v1127 = vsub.f32 1.0, %v284
        %v1128 = vsub.f32 1.0, %v285
        %v1129 = vlog2.pop %v1127
        %v1130 = vmul.f32 %v1129, 0.6931472
        %v1131 = vlog2.pop %v1128
        %v1132 = vmul.f32 %v1131, 0.6931472
        %v1133 = vmax.f32 %v1130, -100.0
        %v1134 = vmax.f32 %v1132, -100.0
        %v1135 = vmul.f32 %v286, %v1125
        %v1136 = vmul.f32 %v287, %v1126
        %v1137 = vsub.f32 1.0, %v286
        %v1138 = vsub.f32 1.0, %v287
        %v1139 = vmul.f32 %v1137, %v1133
        %v1140 = vmul.f32 %v1138, %v1134
        %v1141 = vadd.f32 %v1135, %v1139
        %v1142 = vadd.f32 %v1136, %v1140
        %v1143 = vsub.f32 0.0, %v1141
        %v1144 = vsub.f32 0.0, %v1142
        %v1145 = vsel %vm294, %v1118, 0.0
        %v1146 = vsel %vm294, %v1120, 0.0
        %v1147 = vadd.f32 %v1145, %v1146
        %1148 = vadd.xlane.f32.xlu0 %v1147
        %v1149 = vpop.xlane.xlu0 %1148
        %v1150 = vrot.slane %v1149, 4
        %v1151 = vadd.f32 %v1149, %v1150
        %v1152 = vrot.slane %v1151, 2
        %v1153 = vadd.f32 %v1151, %v1152
        %v1154 = vrot.slane %v1153, 1
        %v1155 = vadd.f32 %v1153, %v1154
        %s1156 = vtos %v1155
        %v1157 = vsel %vm294, %v1143, 0.0
        %v1158 = vsel %vm294, %v1144, 0.0
        %v1159 = vadd.f32 %v1157, %v1158
        %1160 = vadd.xlane.f32.xlu0 %v1159
        %v1161 = vpop.xlane.xlu0 %1160
        %v1162 = vrot.slane %v1161, 4
        %v1163 = vadd.f32 %v1161, %v1162
        %v1164 = vrot.slane %v1163, 2
        %v1165 = vadd.f32 %v1163, %v1164
        %v1166 = vrot.slane %v1165, 1
        %v1167 = vadd.f32 %v1165, %v1166
        %s1168 = vtos %v1167
        %v1169 = vsel %vm294, %v292, 0.0
        %v1170 = vsel %vm294, %v293, 0.0
        %v1171 = vadd.f32 %v1169, %v1170
        %1172 = vadd.xlane.f32.xlu0 %v1171
        %v1173 = vpop.xlane.xlu0 %1172
        %v1174 = vrot.slane %v1173, 4
        %v1175 = vadd.f32 %v1173, %v1174
        %v1176 = vrot.slane %v1175, 2
        %v1177 = vadd.f32 %v1175, %v1176
        %v1178 = vrot.slane %v1177, 1
        %v1179 = vadd.f32 %v1177, %v1178
        %s1180 = vtos %v1179
        %v1181 = vsel %vm294, %v284, 0.0
        %v1182 = vsel %vm294, %v285, 0.0
        %v1183 = vadd.f32 %v1181, %v1182
        %1184 = vadd.xlane.f32.xlu0 %v1183
        %v1185 = vpop.xlane.xlu0 %1184
        %v1186 = vrot.slane %v1185, 4
        %v1187 = vadd.f32 %v1185, %v1186
        %v1188 = vrot.slane %v1187, 2
        %v1189 = vadd.f32 %v1187, %v1188
        %v1190 = vrot.slane %v1189, 1
        %v1191 = vadd.f32 %v1189, %v1190
        %s1192 = vtos %v1191
        %v1193 = vsel %vm294, %v286, 0.0
        %v1194 = vsel %vm294, %v287, 0.0
        %v1195 = vadd.f32 %v1193, %v1194
        %1196 = vadd.xlane.f32.xlu0 %v1195
        %v1197 = vpop.xlane.xlu0 %1196
        %v1198 = vrot.slane %v1197, 4
        %v1199 = vadd.f32 %v1197, %v1198
        %v1200 = vrot.slane %v1199, 2
        %v1201 = vadd.f32 %v1199, %v1200
        %v1202 = vrot.slane %v1201, 1
        %v1203 = vadd.f32 %v1201, %v1202
        %s1204 = vtos %v1203
        %v1205 = vlaneseq
        %v1206 = vand.u32 %v1205, 127
        %vm1207 = vcmp.eq.s32.totalorder %v1206, 0
        %v1208 = vstv %s1156
        %v1209 = vsel %vm1207, %v1208, 0.0
        %vm1210 = vcmp.eq.s32.totalorder %v1206, 1
        %v1211 = vstv %s1168
        %v1212 = vsel %vm1210, %v1211, 0.0
        %v1213 = vadd.f32 %v1209, %v1212
        %vm1214 = vcmp.eq.s32.totalorder %v1206, 2
        %v1215 = vstv %s1180
        %v1216 = vsel %vm1214, %v1215, 0.0
        %v1217 = vadd.f32 %v1213, %v1216
        %vm1218 = vcmp.eq.s32.totalorder %v1206, 3
        %v1219 = vstv %s1192
        %v1220 = vsel %vm1218, %v1219, 0.0
        %v1221 = vadd.f32 %v1217, %v1220
        %vm1222 = vcmp.eq.s32.totalorder %v1206, 4
        %v1223 = vstv %s1204
        %v1224 = vsel %vm1222, %v1223, 0.0
        %v1225 = vadd.f32 %v1221, %v1224
        %1226 = vst [vmem:[%s283] sm:$0x1] %v1225
        %s1227 = sand.u32 %s127, 1
        %s1228 = scalar_lea.sflag [#allocation4], %s1227
        %s1229 = sand.u32 %s127, 1
        %s1230 = scalar_lea.vmem [#allocation10], %s1229
        // Predicated region
        $region53: #{tpu_custom_call.1} parent=35 // pred_check
          %p1231 = pneg %p137
        $region54: #{tpu_custom_call.1} parent=35 // pred_check_branch
          %1233 = sbr.rel (%p1231) target = $region56
        $region55: #{tpu_custom_call.1} parent=35 // pred_region
          %s1235 = ssub.s32 16, 16
          %1236 = vsyncadd %s1228, %s1235
          %s1237 = smul.addr %s25, 16
          %s1238 = scalar_lea.hbm %s4, %s1237
          %s1240 = sshll.u32 %s1230, 4
          %s1241 = int_to_ptr.vmem [resolvable:$true] %s1240
          %1243 = dma.vmem_to_hbm [thread:$0]  %s1241, 16, %s1238, %s1228
        $region56: #{tpu_custom_call.1} parent=35 // pred_fallthru
          _
      $region36: #{tpu_custom_call.1} parent=5 // pred_fallthru
        _
      %p1244 = scmp.le.s32.totalorder 2, %s20
      // Predicated region
      $region57: #{tpu_custom_call.1} parent=5 // pred_check
        %p1245 = pneg %p1244
      $region58: #{tpu_custom_call.1} parent=5 // pred_check_branch
        %1247 = sbr.rel (%p1245) target = $region60
      $region59: #{tpu_custom_call.1} parent=5 // pred_region
        %s1248 = ssub.s32 %s20, 2
        // Predicated region
        $region61: #{tpu_custom_call.1} parent=59 // pred_check
          %p1249 = pneg %p143
        $region62: #{tpu_custom_call.1} parent=59 // pred_check_branch
          %1251 = sbr.rel (%p1249) target = $region64
        $region63: #{tpu_custom_call.1} parent=59 // pred_region
          %s1252 = sand.u32 %s128, 1
          %s1253 = scalar_lea.sflag [#allocation4], %s1252
          %s1254 = sand.u32 %s128, 1
          %s1255 = scalar_lea.vmem [#allocation10], %s1254
          %1256 = dma.done %s1253, 16
        $region64: #{tpu_custom_call.1} parent=59 // pred_fallthru
          _
      $region60: #{tpu_custom_call.1} parent=5 // pred_fallthru
        _
    $region6: #{tpu_custom_call.1} parent=1 // loop_footer
      %s24 = sadd.s32 1, %s20
    $region7: #{tpu_custom_call.1} parent=1 // loop_footer_branch
      %19 = sbr.rel target = $region3
    $region8: #{tpu_custom_call.1} parent=1 // loop_exit
      _
    %1257 = vsyncpa [#allocation3], 1
    %s1258 = scalar_lea.sflag [#allocation3], 1
    %1259 = vsyncpa %s1258, 1
    %1260 = vsyncpa [#allocation6], 1
    %s1261 = scalar_lea.sflag [#allocation6], 1
    %1262 = vsyncpa %s1261, 1
    %1263 = vsyncpa [#allocation9], 1
    %1264 = vsyncpa [#allocation4], 1
    %s1265 = scalar_lea.sflag [#allocation4], 1
    %1266 = vsyncpa %s1265, 1

</llo_original>
